<compile_context>
chip_gen: v7x
topology: tpu7x:2x2x1
jax: 0.10.0
libtpu: 0.0.40
codegen_flags: <defaults>
</compile_context>

<pallas_src>
import functools

import jax
import jax.numpy as jnp
from jax.experimental import pallas as pl
from jax.experimental.pallas import tpu as pltpu


def _layer_norm(x, gamma, eps=1e-5):
    # F.layer_norm with bias=None: biased variance over the last dim (f32 math).
    mu = jnp.mean(x, axis=-1, keepdims=True)
    xc = x - mu
    var = jnp.mean(xc * xc, axis=-1, keepdims=True)
    return xc * jax.lax.rsqrt(var + eps) * gamma


def _encoder_layer_kernel(*refs, heads_per_block: int, norm_first: bool,
                          has_mask: bool):
    if has_mask:
        (x_ref, kT_ref, v_ref, wq_ref, bq_ref, wo_ref, bo_ref,
         w1_ref, b1_ref, w2_ref, b2_ref, g1_ref, g2_ref, mask_ref,
         out_ref, acc_ref, hq_ref) = refs
    else:
        (x_ref, kT_ref, v_ref, wq_ref, bq_ref, wo_ref, bo_ref,
         w1_ref, b1_ref, w2_ref, b2_ref, g1_ref, g2_ref,
         out_ref, acc_ref, hq_ref) = refs
        mask_ref = None

    hb = pl.program_id(2)

    # ---- first head-block: zero accumulator, compute + cache LN1(x) q-tile ----
    @pl.when(hb == 0)
    def _init():
        acc_ref[...] = jnp.zeros(acc_ref.shape, acc_ref.dtype)
        xq = x_ref[0].astype(jnp.float32)
        if norm_first:
            hq_ref[...] = _layer_norm(xq, g1_ref[...]).astype(jnp.bfloat16)
        else:
            hq_ref[...] = xq.astype(jnp.bfloat16)

    hq = hq_ref[...]                                  # (TQ, D) bf16
    mask = mask_ref[...] if has_mask else None        # (TQ, S) f32 or None

    # ---- HB heads per grid step (static unrolled loop, plain 2-D MXU dots) ----
    for i in range(heads_per_block):
        kT = kT_ref[0, i]                             # (hd, S) bf16 (precomputed)
        v = v_ref[0, i]                               # (S, hd) bf16 (precomputed)
        # 1/sqrt(hd) is already folded into wq/bq host-side.
        q = jnp.dot(hq, wq_ref[i],
                    preferred_element_type=jnp.float32) + bq_ref[i]   # (TQ, hd)
        s = jnp.dot(q.astype(jnp.bfloat16), kT,
                    preferred_element_type=jnp.float32)               # (TQ, S)
        if has_mask:
            s = s + mask
        s = s - jnp.max(s, axis=-1, keepdims=True)
        p = jnp.exp(s)
        inv_l = pl.reciprocal(jnp.sum(p, axis=-1, keepdims=True), approx=True)
        ctx = jnp.dot(p.astype(jnp.bfloat16), v,
                      preferred_element_type=jnp.float32) * inv_l     # (TQ, hd)
        acc_ref[...] += jnp.dot(ctx.astype(jnp.bfloat16), wo_ref[i],
                                preferred_element_type=jnp.float32)   # (TQ, D)

    # ---- last head-block: out-proj bias, residual, LayerNorm, FFN, writeback ----
    @pl.when(hb == pl.num_programs(2) - 1)
    def _finalize():
        xq = x_ref[0].astype(jnp.float32)
        attn = acc_ref[...] + bo_ref[...]
        if norm_first:
            x1 = xq + attn
            h2 = _layer_norm(x1, g2_ref[...])
        else:
            x1 = _layer_norm(xq + attn, g1_ref[...])
            h2 = x1
        f = jnp.dot(h2.astype(jnp.bfloat16), w1_ref[...],
                    preferred_element_type=jnp.float32) + b1_ref[...]
        f = jnp.maximum(f, 0.0)
        y = jnp.dot(f.astype(jnp.bfloat16), w2_ref[...],
                    preferred_element_type=jnp.float32) + b2_ref[...]
        out = (x1 + y) if norm_first else _layer_norm(x1 + y, g2_ref[...])
        out_ref[0] = out.astype(out_ref.dtype)


def transformer_encoder_layer(x, attn_mask, params, *, n_heads, norm_first=True,
                              q_tile=256):
    """x: (B, S, D) f32; attn_mask: (S, S) additive f32 mask or None."""
    B, S, D = x.shape
    if D % n_heads != 0:
        raise ValueError(f"d_model={D} must be divisible by n_heads={n_heads}")
    hd = D // n_heads
    dff = params["w1"].shape[1]
    has_mask = attn_mask is not None
    bf16, f32 = jnp.bfloat16, jnp.float32

    # Head blocking: process HB heads per grid step.
    HB = 1
    for cand in (4, 2):
        if n_heads % cand == 0:
            HB = cand
            break
    n_hblocks = n_heads // HB

    # ---- host/XLA-side prep (done once per layer call) ----
    scale = 1.0 / float(hd) ** 0.5
    g1 = params["g1"].astype(f32)
    g2 = params["g2"].astype(f32)
    xf = x.astype(f32)
    h1 = _layer_norm(xf, g1) if norm_first else xf

    # K/V projections hoisted out of the kernel (no per-q-tile recomputation).
    k = h1 @ params["wk"].astype(f32) + params["bk"].astype(f32)
    v = h1 @ params["wv"].astype(f32) + params["bv"].astype(f32)
    kT_h = k.reshape(B, S, n_heads, hd).transpose(0, 2, 3, 1).astype(bf16)  # (B,H,hd,S)
    v_h = v.reshape(B, S, n_heads, hd).transpose(0, 2, 1, 3).astype(bf16)   # (B,H,S,hd)

    # Per-head Q / O projection weights; 1/sqrt(hd) folded into wq/bq host-side.
    wq_h = ((params["wq"].astype(f32) * scale)
            .reshape(D, n_heads, hd).transpose(1, 0, 2).astype(bf16))       # (H,D,hd)
    bq_h = ((params["bq"].astype(f32) * scale)
            .reshape(1, n_heads, hd).transpose(1, 0, 2))                    # (H,1,hd)
    wo_h = params["wo"].reshape(n_heads, hd, D).astype(bf16)                # (H,hd,D)
    bo = params["bo"].astype(f32)
    w1 = params["w1"].astype(bf16)
    b1 = params["b1"].astype(f32)
    w2 = params["w2"].astype(bf16)
    b2 = params["b2"].astype(f32)

    # ---- generation-aware VMEM budget and query-tile choice ----
    try:
        vmem_cap = int(pltpu.get_tpu_info().vmem_capacity_bytes)
    except Exception:
        vmem_cap = 128 * 2**20
    vmem_budget = int(0.85 * vmem_cap)

    def vmem_bytes(tq):
        n_qt = (S + tq - 1) // tq
        blk = (2 * tq * D * 4                                   # x q-tile (f32)
               + 2 * HB * hd * S * 2 * 2                        # kT + v (bf16)
               + 2 * HB * (D * hd * 2 + hd * 4 + hd * D * 2)    # wq, bq, wo
               + D * 4                                          # bo (single)
               + D * dff * 2 + dff * 4 + dff * D * 2 + D * 4    # FFN (single)
               + 2 * D * 4                                      # g1, g2 (single)
               + 2 * tq * D * 4)                                # out
        if has_mask:
            blk += (1 if n_qt == 1 else 2) * tq * S * 4
        scratch = tq * D * 4 + tq * D * 2
        temps = 3 * tq * S * 4 + tq * dff * 4 + 4 * tq * hd * 4
        return blk + scratch + temps

    cands = []
    t = min(q_tile, S)
    while t >= 8:
        cands.append(t)
        t //= 2
    div_cands = [t for t in cands if S % t == 0]
    TQ = None
    for t in div_cands:
        if vmem_bytes(t) <= vmem_budget:
            TQ = t
            break
    if TQ is None:
        # TODO(synk): masked tail q-tile for S not divisible by a small power of two.
        TQ = div_cands[-1] if div_cands else S
    n_q_tiles = S // TQ
    vmem_limit = int(min(vmem_budget, max(32 * 2**20, int(1.25 * vmem_bytes(TQ)))))

    grid = (B, n_q_tiles, n_hblocks)
    single = pl.Buffered(1)

    def const(shape):
        return pl.BlockSpec(shape, lambda b, qi, h: (0,) * len(shape),
                            pipeline_mode=single)

    in_specs = [
        pl.BlockSpec((1, TQ, D), lambda b, qi, h: (b, qi, 0)),        # x q-tile (f32)
        pl.BlockSpec((1, HB, hd, S), lambda b, qi, h: (b, h, 0, 0)),  # K^T (bf16)
        pl.BlockSpec((1, HB, S, hd), lambda b, qi, h: (b, h, 0, 0)),  # V   (bf16)
        pl.BlockSpec((HB, D, hd), lambda b, qi, h: (h, 0, 0)),        # wq (scaled)
        pl.BlockSpec((HB, 1, hd), lambda b, qi, h: (h, 0, 0)),        # bq (scaled)
        pl.BlockSpec((HB, hd, D), lambda b, qi, h: (h, 0, 0)),        # wo
        const((1, D)),                                                # bo
        const((D, dff)), const((1, dff)),                             # w1, b1
        const((dff, D)), const((1, D)),                               # w2, b2
        const((1, D)), const((1, D)),                                 # norm1.w, norm2.w
    ]
    args = [x, kT_h, v_h, wq_h, bq_h, wo_h, bo, w1, b1, w2, b2, g1, g2]
    if has_mask:
        if n_q_tiles == 1:
            mask_spec = pl.BlockSpec((TQ, S), lambda b, qi, h: (qi, 0),
                                     pipeline_mode=single)
        else:
            mask_spec = pl.BlockSpec((TQ, S), lambda b, qi, h: (qi, 0))
        in_specs.append(mask_spec)
        args.append(attn_mask.astype(f32))

    kernel = functools.partial(_encoder_layer_kernel, heads_per_block=HB,
                               norm_first=norm_first, has_mask=has_mask)

    return pl.pallas_call(
        kernel,
        out_shape=jax.ShapeDtypeStruct((B, S, D), x.dtype),
        grid_spec=pltpu.PrefetchScalarGridSpec(
            num_scalar_prefetch=0,
            grid=grid,
            in_specs=in_specs,
            out_specs=pl.BlockSpec((1, TQ, D), lambda b, qi, h: (b, qi, 0)),
            scratch_shapes=[
                pltpu.VMEM((TQ, D), jnp.float32),    # attention accumulator
                pltpu.VMEM((TQ, D), jnp.bfloat16),   # LN1(x) / cast x q-tile cache
            ],
        ),
        compiler_params=pltpu.CompilerParams(
            dimension_semantics=("parallel", "parallel", "arbitrary"),
            vmem_limit_bytes=vmem_limit,
        ),
    )(*args)


def _reference(x, mask, p, n_heads, norm_first=True):
    """Pure-JAX f32 reference mirroring the PyTorch forward (eval mode)."""
    def ln(h, g):
        mu = jnp.mean(h, -1, keepdims=True)
        var = jnp.mean((h - mu) ** 2, -1, keepdims=True)
        return (h - mu) / jnp.sqrt(var + 1e-5) * g

    def sa(h):
        B, S, D = h.shape
        hd = D // n_heads
        q = h @ p["wq"] + p["bq"]
        k = h @ p["wk"] + p["bk"]
        v = h @ p["wv"] + p["bv"]
        q = q.reshape(B, S, n_heads, hd).transpose(0, 2, 1, 3)
        k = k.reshape(B, S, n_heads, hd).transpose(0, 2, 1, 3)
        v = v.reshape(B, S, n_heads, hd).transpose(0, 2, 1, 3)
        s = jnp.einsum("bhqd,bhkd->bhqk", q, k) / jnp.sqrt(hd)
        if mask is not None:
            s = s + mask
        a = jax.nn.softmax(s, axis=-1)
        o = jnp.einsum("bhqk,bhkd->bhqd", a, v).transpose(0, 2, 1, 3).reshape(B, S, D)
        return o @ p["wo"] + p["bo"]

    def ff(h):
        return jnp.maximum(h @ p["w1"] + p["b1"], 0.0) @ p["w2"] + p["b2"]

    if norm_first:
        x = x + sa(ln(x, p["g1"]))
        x = x + ff(ln(x, p["g2"]))
    else:
        x = ln(x + sa(x), p["g1"])
        x = ln(x + ff(x), p["g2"])
    return x


if __name__ == "__main__":
    B, S, D = 2, 8, 32
    n_heads, dff = 4, 64

    key = jax.random.PRNGKey(0)
    ks = jax.random.split(key, 16)

    def init(k, shape, scale=0.1):
        return jax.random.normal(k, shape, jnp.float32) * scale

    params = {
        "wq": init(ks[0], (D, D)), "bq": init(ks[1], (1, D)),
        "wk": init(ks[2], (D, D)), "bk": init(ks[3], (1, D)),
        "wv": init(ks[4], (D, D)), "bv": init(ks[5], (1, D)),
        "wo": init(ks[6], (D, D)), "bo": init(ks[7], (1, D)),
        "w1": init(ks[8], (D, dff)), "b1": init(ks[9], (1, dff)),
        "w2": init(ks[10], (dff, D)), "b2": init(ks[11], (1, D)),
        "g1": jnp.ones((1, D), jnp.float32),   # LayerNorm(d_model, bias=False)
        "g2": jnp.ones((1, D), jnp.float32),
    }

    x = jax.random.normal(ks[12], (B, S, D), jnp.float32)
    causal = jnp.where(jnp.arange(S)[None, :] <= jnp.arange(S)[:, None],
                       0.0, -1e9).astype(jnp.float32)

    tests = [
        (None, True),      # pre-norm, no mask
        (causal, True),    # pre-norm, causal additive mask
        (None, False),     # post-norm, no mask
    ]
    for mask, nf in tests:
        out = transformer_encoder_layer(x, mask, params, n_heads=n_heads,
                                        norm_first=nf)
        out = jax.block_until_ready(out)
        ref = _reference(x, mask, params, n_heads, norm_first=nf)
        assert out.shape == (B, S, D)
        err = float(jnp.max(jnp.abs(out - ref)))
        # bf16 matmul operands -> tolerance slightly looser than pure-f32.
        assert jnp.allclose(out, ref, atol=3e-2, rtol=3e-2), \
            f"mismatch vs reference (norm_first={nf}, mask={mask is not None}, " \
            f"max abs err {err})"

    print("KERNEL_OK")
</pallas_src>

<mosaic_0001>
module attributes {stable_mosaic.version = 11 : i64} {
  func.func @_encoder_layer_kernel(%arg0: i32, %arg1: i32, %arg2: i32, %arg3: memref<1x8x32xf32, #tpu.memory_space<vmem>>, %arg4: memref<1x4x8x8xbf16, #tpu.memory_space<vmem>>, %arg5: memref<1x4x8x8xbf16, #tpu.memory_space<vmem>>, %arg6: memref<4x32x8xbf16, #tpu.memory_space<vmem>>, %arg7: memref<4x1x8xf32, #tpu.memory_space<vmem>>, %arg8: memref<4x8x32xbf16, #tpu.memory_space<vmem>>, %arg9: memref<1x32xf32, #tpu.memory_space<vmem>>, %arg10: memref<32x64xbf16, #tpu.memory_space<vmem>>, %arg11: memref<1x64xf32, #tpu.memory_space<vmem>>, %arg12: memref<64x32xbf16, #tpu.memory_space<vmem>>, %arg13: memref<1x32xf32, #tpu.memory_space<vmem>>, %arg14: memref<1x32xf32, #tpu.memory_space<vmem>>, %arg15: memref<1x32xf32, #tpu.memory_space<vmem>>, %arg16: memref<1x8x32xf32, #tpu.memory_space<vmem>>, %arg17: memref<8x32xf32, #tpu.memory_space<vmem>>, %arg18: memref<8x32xbf16, #tpu.memory_space<vmem>>) attributes {dimension_semantics = [#tpu.dimension_semantics<parallel>, #tpu.dimension_semantics<parallel>, #tpu.dimension_semantics<arbitrary>], iteration_bounds = array<i64: 2, 1, 1>, scalar_prefetch = 0 : i64, scratch_operands = 2 : i64, tpu.core_type = #tpu.core_type<tc>, window_params = [{transform_indices = @transform_0, window_bounds = array<i64: 1, 8, 32>}, {transform_indices = @transform_1, window_bounds = array<i64: 1, 4, 8, 8>}, {transform_indices = @transform_2, window_bounds = array<i64: 1, 4, 8, 8>}, {transform_indices = @transform_3, window_bounds = array<i64: 4, 32, 8>}, {transform_indices = @transform_4, window_bounds = array<i64: 4, 1, 8>}, {transform_indices = @transform_5, window_bounds = array<i64: 4, 8, 32>}, {pipeline_mode = #tpu.pipeline_mode<synchronous>, transform_indices = @transform_6, window_bounds = array<i64: 1, 32>}, {pipeline_mode = #tpu.pipeline_mode<synchronous>, transform_indices = @transform_7, window_bounds = array<i64: 32, 64>}, {pipeline_mode = #tpu.pipeline_mode<synchronous>, transform_indices = @transform_8, window_bounds = array<i64: 1, 64>}, {pipeline_mode = #tpu.pipeline_mode<synchronous>, transform_indices = @transform_9, window_bounds = array<i64: 64, 32>}, {pipeline_mode = #tpu.pipeline_mode<synchronous>, transform_indices = @transform_10, window_bounds = array<i64: 1, 32>}, {pipeline_mode = #tpu.pipeline_mode<synchronous>, transform_indices = @transform_11, window_bounds = array<i64: 1, 32>}, {pipeline_mode = #tpu.pipeline_mode<synchronous>, transform_indices = @transform_12, window_bounds = array<i64: 1, 32>}, {transform_indices = @transform_13, window_bounds = array<i64: 1, 8, 32>}]} {
    %c0_i32 = arith.constant 0 : i32
    %0 = arith.cmpi eq, %arg2, %c0_i32 : i32
    %1 = arith.extui %0 : i1 to i32
    %c0_i32_0 = arith.constant 0 : i32
    %2 = arith.cmpi ne, %1, %c0_i32_0 : i32
    scf.if %2 {
      %cst_108 = arith.constant 0.000000e+00 : f32
      %135 = vector.broadcast %cst_108 : f32 to vector<8x32xf32>
      %c0_109 = arith.constant 0 : index
      %c0_110 = arith.constant 0 : index
      %136 = vector.load %arg17[%c0_109, %c0_110] : memref<8x32xf32, #tpu.memory_space<vmem>>, vector<8x32xf32>
      tpu.vector_store %arg17[%c0_109, %c0_110], %135 {strides = array<i32>} : memref<8x32xf32, #tpu.memory_space<vmem>>, vector<8x32xf32>,
      %c0_111 = arith.constant 0 : index
      %c0_112 = arith.constant 0 : index
      %c0_113 = arith.constant 0 : index
      %137 = vector.load %arg3[%c0_111, %c0_112, %c0_113] : memref<1x8x32xf32, #tpu.memory_space<vmem>>, vector<1x8x32xf32>
      %138 = vector.shape_cast %137 : vector<1x8x32xf32> to vector<8x32xf32>
      %c0_114 = arith.constant 0 : index
      %c0_115 = arith.constant 0 : index
      %139 = vector.load %arg14[%c0_114, %c0_115] : memref<1x32xf32, #tpu.memory_space<vmem>>, vector<1x32xf32>
      %cst_116 = arith.constant dense<0.000000e+00> : vector<8xf32>
      %140 = vector.multi_reduction <add>, %138, %cst_116 [1] : vector<8x32xf32> to vector<8xf32>
      %141 = vector.shape_cast %140 : vector<8xf32> to vector<8x1xf32>
      %cst_117 = arith.constant 3.200000e+01 : f32
      %142 = vector.broadcast %cst_117 : f32 to vector<8x1xf32>
      %143 = arith.divf %141, %142 : vector<8x1xf32>
      %144 = vector.broadcast %143 : vector<8x1xf32> to vector<8x32xf32>
      %145 = arith.subf %138, %144 : vector<8x32xf32>
      %146 = arith.mulf %145, %145 : vector<8x32xf32>
      %cst_118 = arith.constant dense<0.000000e+00> : vector<8xf32>
      %147 = vector.multi_reduction <add>, %146, %cst_118 [1] : vector<8x32xf32> to vector<8xf32>
      %148 = vector.shape_cast %147 : vector<8xf32> to vector<8x1xf32>
      %cst_119 = arith.constant 3.200000e+01 : f32
      %149 = vector.broadcast %cst_119 : f32 to vector<8x1xf32>
      %150 = arith.divf %148, %149 : vector<8x1xf32>
      %cst_120 = arith.constant 9.99999974E-6 : f32
      %151 = vector.broadcast %cst_120 : f32 to vector<8x1xf32>
      %152 = arith.addf %150, %151 : vector<8x1xf32>
      %153 = math.rsqrt %152 : vector<8x1xf32>
      %154 = vector.broadcast %153 : vector<8x1xf32> to vector<8x32xf32>
      %155 = arith.mulf %145, %154 : vector<8x32xf32>
      %156 = vector.broadcast %139 : vector<1x32xf32> to vector<8x32xf32>
      %157 = arith.mulf %155, %156 : vector<8x32xf32>
      %158 = arith.truncf %157 : vector<8x32xf32> to vector<8x32xbf16>
      %c0_121 = arith.constant 0 : index
      %c0_122 = arith.constant 0 : index
      %159 = vector.load %arg18[%c0_121, %c0_122] : memref<8x32xbf16, #tpu.memory_space<vmem>>, vector<8x32xbf16>
      tpu.vector_store %arg18[%c0_121, %c0_122], %158 {strides = array<i32>} : memref<8x32xbf16, #tpu.memory_space<vmem>>, vector<8x32xbf16>,
    } else {
    }
    %c0 = arith.constant 0 : index
    %c0_1 = arith.constant 0 : index
    %3 = vector.load %arg18[%c0, %c0_1] : memref<8x32xbf16, #tpu.memory_space<vmem>>, vector<8x32xbf16>
    %c0_2 = arith.constant 0 : index
    %c0_3 = arith.constant 0 : index
    %c0_4 = arith.constant 0 : index
    %c0_5 = arith.constant 0 : index
    %4 = vector.load %arg4[%c0_2, %c0_3, %c0_4, %c0_5] : memref<1x4x8x8xbf16, #tpu.memory_space<vmem>>, vector<1x1x8x8xbf16>
    %5 = vector.shape_cast %4 : vector<1x1x8x8xbf16> to vector<8x8xbf16>
    %c0_6 = arith.constant 0 : index
    %c0_7 = arith.constant 0 : index
    %c0_8 = arith.constant 0 : index
    %c0_9 = arith.constant 0 : index
    %6 = vector.load %arg5[%c0_6, %c0_7, %c0_8, %c0_9] : memref<1x4x8x8xbf16, #tpu.memory_space<vmem>>, vector<1x1x8x8xbf16>
    %7 = vector.shape_cast %6 : vector<1x1x8x8xbf16> to vector<8x8xbf16>
    %c0_10 = arith.constant 0 : index
    %c0_11 = arith.constant 0 : index
    %c0_12 = arith.constant 0 : index
    %8 = vector.load %arg6[%c0_10, %c0_11, %c0_12] : memref<4x32x8xbf16, #tpu.memory_space<vmem>>, vector<1x32x8xbf16>
    %9 = vector.shape_cast %8 : vector<1x32x8xbf16> to vector<32x8xbf16>
    %cst = arith.constant dense<0.000000e+00> : vector<8x8xf32>
    %10 = tpu.matmul %3, %9, %cst {dimension_numbers = #tpu.dot_dimension_numbers<[1], [0], [0], [1], [0, 0, 1, 1], [], []>} : vector<8x32xbf16>, vector<32x8xbf16>, vector<8x8xf32> -> vector<8x8xf32>
    %c0_13 = arith.constant 0 : index
    %c0_14 = arith.constant 0 : index
    %c0_15 = arith.constant 0 : index
    %11 = vector.load %arg7[%c0_13, %c0_14, %c0_15] : memref<4x1x8xf32, #tpu.memory_space<vmem>>, vector<1x1x8xf32>
    %12 = vector.shape_cast %11 : vector<1x1x8xf32> to vector<1x8xf32>
    %13 = vector.broadcast %12 : vector<1x8xf32> to vector<8x8xf32>
    %14 = arith.addf %10, %13 : vector<8x8xf32>
    %15 = arith.truncf %14 : vector<8x8xf32> to vector<8x8xbf16>
    %cst_16 = arith.constant dense<0.000000e+00> : vector<8x8xf32>
    %16 = tpu.matmul %15, %5, %cst_16 {dimension_numbers = #tpu.dot_dimension_numbers<[1], [0], [0], [1], [0, 0, 1, 1], [], []>} : vector<8x8xbf16>, vector<8x8xbf16>, vector<8x8xf32> -> vector<8x8xf32>
    %cst_17 = arith.constant dense<0xFF800000> : vector<8xf32>
    %17 = vector.multi_reduction <maximumf>, %16, %cst_17 [1] : vector<8x8xf32> to vector<8xf32>
    %18 = vector.shape_cast %17 : vector<8xf32> to vector<8x1xf32>
    %19 = vector.broadcast %18 : vector<8x1xf32> to vector<8x8xf32>
    %20 = arith.subf %16, %19 : vector<8x8xf32>
    %21 = math.exp %20 : vector<8x8xf32>
    %cst_18 = arith.constant dense<0.000000e+00> : vector<8xf32>
    %22 = vector.multi_reduction <add>, %21, %cst_18 [1] : vector<8x8xf32> to vector<8xf32>
    %23 = vector.shape_cast %22 : vector<8xf32> to vector<8x1xf32>
    %24 = tpu.reciprocal %23 {approx = true} : vector<8x1xf32> -> vector<8x1xf32>
    %25 = arith.truncf %21 : vector<8x8xf32> to vector<8x8xbf16>
    %cst_19 = arith.constant dense<0.000000e+00> : vector<8x8xf32>
    %26 = tpu.matmul %25, %7, %cst_19 {dimension_numbers = #tpu.dot_dimension_numbers<[1], [0], [0], [1], [0, 0, 1, 1], [], []>} : vector<8x8xbf16>, vector<8x8xbf16>, vector<8x8xf32> -> vector<8x8xf32>
    %27 = vector.broadcast %24 : vector<8x1xf32> to vector<8x8xf32>
    %28 = arith.mulf %26, %27 : vector<8x8xf32>
    %c0_20 = arith.constant 0 : index
    %c0_21 = arith.constant 0 : index
    %29 = vector.load %arg17[%c0_20, %c0_21] : memref<8x32xf32, #tpu.memory_space<vmem>>, vector<8x32xf32>
    %30 = arith.truncf %28 : vector<8x8xf32> to vector<8x8xbf16>
    %c0_22 = arith.constant 0 : index
    %c0_23 = arith.constant 0 : index
    %c0_24 = arith.constant 0 : index
    %31 = vector.load %arg8[%c0_22, %c0_23, %c0_24] : memref<4x8x32xbf16, #tpu.memory_space<vmem>>, vector<1x8x32xbf16>
    %32 = vector.shape_cast %31 : vector<1x8x32xbf16> to vector<8x32xbf16>
    %cst_25 = arith.constant dense<0.000000e+00> : vector<8x32xf32>
    %33 = tpu.matmul %30, %32, %cst_25 {dimension_numbers = #tpu.dot_dimension_numbers<[1], [0], [0], [1], [0, 0, 1, 1], [], []>} : vector<8x8xbf16>, vector<8x32xbf16>, vector<8x32xf32> -> vector<8x32xf32>
    %34 = arith.addf %29, %33 : vector<8x32xf32>
    %c0_26 = arith.constant 0 : index
    %c0_27 = arith.constant 0 : index
    %35 = vector.load %arg17[%c0_26, %c0_27] : memref<8x32xf32, #tpu.memory_space<vmem>>, vector<8x32xf32>
    tpu.vector_store %arg17[%c0_26, %c0_27], %34 {strides = array<i32>} : memref<8x32xf32, #tpu.memory_space<vmem>>, vector<8x32xf32>,
    %c0_28 = arith.constant 0 : index
    %c1 = arith.constant 1 : index
    %c0_29 = arith.constant 0 : index
    %c0_30 = arith.constant 0 : index
    %36 = vector.load %arg4[%c0_28, %c1, %c0_29, %c0_30] : memref<1x4x8x8xbf16, #tpu.memory_space<vmem>>, vector<1x1x8x8xbf16>
    %37 = vector.shape_cast %36 : vector<1x1x8x8xbf16> to vector<8x8xbf16>
    %c0_31 = arith.constant 0 : index
    %c1_32 = arith.constant 1 : index
    %c0_33 = arith.constant 0 : index
    %c0_34 = arith.constant 0 : index
    %38 = vector.load %arg5[%c0_31, %c1_32, %c0_33, %c0_34] : memref<1x4x8x8xbf16, #tpu.memory_space<vmem>>, vector<1x1x8x8xbf16>
    %39 = vector.shape_cast %38 : vector<1x1x8x8xbf16> to vector<8x8xbf16>
    %c1_35 = arith.constant 1 : index
    %c0_36 = arith.constant 0 : index
    %c0_37 = arith.constant 0 : index
    %40 = vector.load %arg6[%c1_35, %c0_36, %c0_37] : memref<4x32x8xbf16, #tpu.memory_space<vmem>>, vector<1x32x8xbf16>
    %41 = vector.shape_cast %40 : vector<1x32x8xbf16> to vector<32x8xbf16>
    %cst_38 = arith.constant dense<0.000000e+00> : vector<8x8xf32>
    %42 = tpu.matmul %3, %41, %cst_38 {dimension_numbers = #tpu.dot_dimension_numbers<[1], [0], [0], [1], [0, 0, 1, 1], [], []>} : vector<8x32xbf16>, vector<32x8xbf16>, vector<8x8xf32> -> vector<8x8xf32>
    %c1_39 = arith.constant 1 : index
    %c0_40 = arith.constant 0 : index
    %c0_41 = arith.constant 0 : index
    %43 = vector.load %arg7[%c1_39, %c0_40, %c0_41] : memref<4x1x8xf32, #tpu.memory_space<vmem>>, vector<1x1x8xf32>
    %44 = vector.shape_cast %43 : vector<1x1x8xf32> to vector<1x8xf32>
    %45 = vector.broadcast %44 : vector<1x8xf32> to vector<8x8xf32>
    %46 = arith.addf %42, %45 : vector<8x8xf32>
    %47 = arith.truncf %46 : vector<8x8xf32> to vector<8x8xbf16>
    %cst_42 = arith.constant dense<0.000000e+00> : vector<8x8xf32>
    %48 = tpu.matmul %47, %37, %cst_42 {dimension_numbers = #tpu.dot_dimension_numbers<[1], [0], [0], [1], [0, 0, 1, 1], [], []>} : vector<8x8xbf16>, vector<8x8xbf16>, vector<8x8xf32> -> vector<8x8xf32>
    %cst_43 = arith.constant dense<0xFF800000> : vector<8xf32>
    %49 = vector.multi_reduction <maximumf>, %48, %cst_43 [1] : vector<8x8xf32> to vector<8xf32>
    %50 = vector.shape_cast %49 : vector<8xf32> to vector<8x1xf32>
    %51 = vector.broadcast %50 : vector<8x1xf32> to vector<8x8xf32>
    %52 = arith.subf %48, %51 : vector<8x8xf32>
    %53 = math.exp %52 : vector<8x8xf32>
    %cst_44 = arith.constant dense<0.000000e+00> : vector<8xf32>
    %54 = vector.multi_reduction <add>, %53, %cst_44 [1] : vector<8x8xf32> to vector<8xf32>
    %55 = vector.shape_cast %54 : vector<8xf32> to vector<8x1xf32>
    %56 = tpu.reciprocal %55 {approx = true} : vector<8x1xf32> -> vector<8x1xf32>
    %57 = arith.truncf %53 : vector<8x8xf32> to vector<8x8xbf16>
    %cst_45 = arith.constant dense<0.000000e+00> : vector<8x8xf32>
    %58 = tpu.matmul %57, %39, %cst_45 {dimension_numbers = #tpu.dot_dimension_numbers<[1], [0], [0], [1], [0, 0, 1, 1], [], []>} : vector<8x8xbf16>, vector<8x8xbf16>, vector<8x8xf32> -> vector<8x8xf32>
    %59 = vector.broadcast %56 : vector<8x1xf32> to vector<8x8xf32>
    %60 = arith.mulf %58, %59 : vector<8x8xf32>
    %c0_46 = arith.constant 0 : index
    %c0_47 = arith.constant 0 : index
    %61 = vector.load %arg17[%c0_46, %c0_47] : memref<8x32xf32, #tpu.memory_space<vmem>>, vector<8x32xf32>
    %62 = arith.truncf %60 : vector<8x8xf32> to vector<8x8xbf16>
    %c1_48 = arith.constant 1 : index
    %c0_49 = arith.constant 0 : index
    %c0_50 = arith.constant 0 : index
    %63 = vector.load %arg8[%c1_48, %c0_49, %c0_50] : memref<4x8x32xbf16, #tpu.memory_space<vmem>>, vector<1x8x32xbf16>
    %64 = vector.shape_cast %63 : vector<1x8x32xbf16> to vector<8x32xbf16>
    %cst_51 = arith.constant dense<0.000000e+00> : vector<8x32xf32>
    %65 = tpu.matmul %62, %64, %cst_51 {dimension_numbers = #tpu.dot_dimension_numbers<[1], [0], [0], [1], [0, 0, 1, 1], [], []>} : vector<8x8xbf16>, vector<8x32xbf16>, vector<8x32xf32> -> vector<8x32xf32>
    %66 = arith.addf %61, %65 : vector<8x32xf32>
    %c0_52 = arith.constant 0 : index
    %c0_53 = arith.constant 0 : index
    %67 = vector.load %arg17[%c0_52, %c0_53] : memref<8x32xf32, #tpu.memory_space<vmem>>, vector<8x32xf32>
    tpu.vector_store %arg17[%c0_52, %c0_53], %66 {strides = array<i32>} : memref<8x32xf32, #tpu.memory_space<vmem>>, vector<8x32xf32>,
    %c0_54 = arith.constant 0 : index
    %c2 = arith.constant 2 : index
    %c0_55 = arith.constant 0 : index
    %c0_56 = arith.constant 0 : index
    %68 = vector.load %arg4[%c0_54, %c2, %c0_55, %c0_56] : memref<1x4x8x8xbf16, #tpu.memory_space<vmem>>, vector<1x1x8x8xbf16>
    %69 = vector.shape_cast %68 : vector<1x1x8x8xbf16> to vector<8x8xbf16>
    %c0_57 = arith.constant 0 : index
    %c2_58 = arith.constant 2 : index
    %c0_59 = arith.constant 0 : index
    %c0_60 = arith.constant 0 : index
    %70 = vector.load %arg5[%c0_57, %c2_58, %c0_59, %c0_60] : memref<1x4x8x8xbf16, #tpu.memory_space<vmem>>, vector<1x1x8x8xbf16>
    %71 = vector.shape_cast %70 : vector<1x1x8x8xbf16> to vector<8x8xbf16>
    %c2_61 = arith.constant 2 : index
    %c0_62 = arith.constant 0 : index
    %c0_63 = arith.constant 0 : index
    %72 = vector.load %arg6[%c2_61, %c0_62, %c0_63] : memref<4x32x8xbf16, #tpu.memory_space<vmem>>, vector<1x32x8xbf16>
    %73 = vector.shape_cast %72 : vector<1x32x8xbf16> to vector<32x8xbf16>
    %cst_64 = arith.constant dense<0.000000e+00> : vector<8x8xf32>
    %74 = tpu.matmul %3, %73, %cst_64 {dimension_numbers = #tpu.dot_dimension_numbers<[1], [0], [0], [1], [0, 0, 1, 1], [], []>} : vector<8x32xbf16>, vector<32x8xbf16>, vector<8x8xf32> -> vector<8x8xf32>
    %c2_65 = arith.constant 2 : index
    %c0_66 = arith.constant 0 : index
    %c0_67 = arith.constant 0 : index
    %75 = vector.load %arg7[%c2_65, %c0_66, %c0_67] : memref<4x1x8xf32, #tpu.memory_space<vmem>>, vector<1x1x8xf32>
    %76 = vector.shape_cast %75 : vector<1x1x8xf32> to vector<1x8xf32>
    %77 = vector.broadcast %76 : vector<1x8xf32> to vector<8x8xf32>
    %78 = arith.addf %74, %77 : vector<8x8xf32>
    %79 = arith.truncf %78 : vector<8x8xf32> to vector<8x8xbf16>
    %cst_68 = arith.constant dense<0.000000e+00> : vector<8x8xf32>
    %80 = tpu.matmul %79, %69, %cst_68 {dimension_numbers = #tpu.dot_dimension_numbers<[1], [0], [0], [1], [0, 0, 1, 1], [], []>} : vector<8x8xbf16>, vector<8x8xbf16>, vector<8x8xf32> -> vector<8x8xf32>
    %cst_69 = arith.constant dense<0xFF800000> : vector<8xf32>
    %81 = vector.multi_reduction <maximumf>, %80, %cst_69 [1] : vector<8x8xf32> to vector<8xf32>
    %82 = vector.shape_cast %81 : vector<8xf32> to vector<8x1xf32>
    %83 = vector.broadcast %82 : vector<8x1xf32> to vector<8x8xf32>
    %84 = arith.subf %80, %83 : vector<8x8xf32>
    %85 = math.exp %84 : vector<8x8xf32>
    %cst_70 = arith.constant dense<0.000000e+00> : vector<8xf32>
    %86 = vector.multi_reduction <add>, %85, %cst_70 [1] : vector<8x8xf32> to vector<8xf32>
    %87 = vector.shape_cast %86 : vector<8xf32> to vector<8x1xf32>
    %88 = tpu.reciprocal %87 {approx = true} : vector<8x1xf32> -> vector<8x1xf32>
    %89 = arith.truncf %85 : vector<8x8xf32> to vector<8x8xbf16>
    %cst_71 = arith.constant dense<0.000000e+00> : vector<8x8xf32>
    %90 = tpu.matmul %89, %71, %cst_71 {dimension_numbers = #tpu.dot_dimension_numbers<[1], [0], [0], [1], [0, 0, 1, 1], [], []>} : vector<8x8xbf16>, vector<8x8xbf16>, vector<8x8xf32> -> vector<8x8xf32>
    %91 = vector.broadcast %88 : vector<8x1xf32> to vector<8x8xf32>
    %92 = arith.mulf %90, %91 : vector<8x8xf32>
    %c0_72 = arith.constant 0 : index
    %c0_73 = arith.constant 0 : index
    %93 = vector.load %arg17[%c0_72, %c0_73] : memref<8x32xf32, #tpu.memory_space<vmem>>, vector<8x32xf32>
    %94 = arith.truncf %92 : vector<8x8xf32> to vector<8x8xbf16>
    %c2_74 = arith.constant 2 : index
    %c0_75 = arith.constant 0 : index
    %c0_76 = arith.constant 0 : index
    %95 = vector.load %arg8[%c2_74, %c0_75, %c0_76] : memref<4x8x32xbf16, #tpu.memory_space<vmem>>, vector<1x8x32xbf16>
    %96 = vector.shape_cast %95 : vector<1x8x32xbf16> to vector<8x32xbf16>
    %cst_77 = arith.constant dense<0.000000e+00> : vector<8x32xf32>
    %97 = tpu.matmul %94, %96, %cst_77 {dimension_numbers = #tpu.dot_dimension_numbers<[1], [0], [0], [1], [0, 0, 1, 1], [], []>} : vector<8x8xbf16>, vector<8x32xbf16>, vector<8x32xf32> -> vector<8x32xf32>
    %98 = arith.addf %93, %97 : vector<8x32xf32>
    %c0_78 = arith.constant 0 : index
    %c0_79 = arith.constant 0 : index
    %99 = vector.load %arg17[%c0_78, %c0_79] : memref<8x32xf32, #tpu.memory_space<vmem>>, vector<8x32xf32>
    tpu.vector_store %arg17[%c0_78, %c0_79], %98 {strides = array<i32>} : memref<8x32xf32, #tpu.memory_space<vmem>>, vector<8x32xf32>,
    %c0_80 = arith.constant 0 : index
    %c3 = arith.constant 3 : index
    %c0_81 = arith.constant 0 : index
    %c0_82 = arith.constant 0 : index
    %100 = vector.load %arg4[%c0_80, %c3, %c0_81, %c0_82] : memref<1x4x8x8xbf16, #tpu.memory_space<vmem>>, vector<1x1x8x8xbf16>
    %101 = vector.shape_cast %100 : vector<1x1x8x8xbf16> to vector<8x8xbf16>
    %c0_83 = arith.constant 0 : index
    %c3_84 = arith.constant 3 : index
    %c0_85 = arith.constant 0 : index
    %c0_86 = arith.constant 0 : index
    %102 = vector.load %arg5[%c0_83, %c3_84, %c0_85, %c0_86] : memref<1x4x8x8xbf16, #tpu.memory_space<vmem>>, vector<1x1x8x8xbf16>
    %103 = vector.shape_cast %102 : vector<1x1x8x8xbf16> to vector<8x8xbf16>
    %c3_87 = arith.constant 3 : index
    %c0_88 = arith.constant 0 : index
    %c0_89 = arith.constant 0 : index
    %104 = vector.load %arg6[%c3_87, %c0_88, %c0_89] : memref<4x32x8xbf16, #tpu.memory_space<vmem>>, vector<1x32x8xbf16>
    %105 = vector.shape_cast %104 : vector<1x32x8xbf16> to vector<32x8xbf16>
    %cst_90 = arith.constant dense<0.000000e+00> : vector<8x8xf32>
    %106 = tpu.matmul %3, %105, %cst_90 {dimension_numbers = #tpu.dot_dimension_numbers<[1], [0], [0], [1], [0, 0, 1, 1], [], []>} : vector<8x32xbf16>, vector<32x8xbf16>, vector<8x8xf32> -> vector<8x8xf32>
    %c3_91 = arith.constant 3 : index
    %c0_92 = arith.constant 0 : index
    %c0_93 = arith.constant 0 : index
    %107 = vector.load %arg7[%c3_91, %c0_92, %c0_93] : memref<4x1x8xf32, #tpu.memory_space<vmem>>, vector<1x1x8xf32>
    %108 = vector.shape_cast %107 : vector<1x1x8xf32> to vector<1x8xf32>
    %109 = vector.broadcast %108 : vector<1x8xf32> to vector<8x8xf32>
    %110 = arith.addf %106, %109 : vector<8x8xf32>
    %111 = arith.truncf %110 : vector<8x8xf32> to vector<8x8xbf16>
    %cst_94 = arith.constant dense<0.000000e+00> : vector<8x8xf32>
    %112 = tpu.matmul %111, %101, %cst_94 {dimension_numbers = #tpu.dot_dimension_numbers<[1], [0], [0], [1], [0, 0, 1, 1], [], []>} : vector<8x8xbf16>, vector<8x8xbf16>, vector<8x8xf32> -> vector<8x8xf32>
    %cst_95 = arith.constant dense<0xFF800000> : vector<8xf32>
    %113 = vector.multi_reduction <maximumf>, %112, %cst_95 [1] : vector<8x8xf32> to vector<8xf32>
    %114 = vector.shape_cast %113 : vector<8xf32> to vector<8x1xf32>
    %115 = vector.broadcast %114 : vector<8x1xf32> to vector<8x8xf32>
    %116 = arith.subf %112, %115 : vector<8x8xf32>
    %117 = math.exp %116 : vector<8x8xf32>
    %cst_96 = arith.constant dense<0.000000e+00> : vector<8xf32>
    %118 = vector.multi_reduction <add>, %117, %cst_96 [1] : vector<8x8xf32> to vector<8xf32>
    %119 = vector.shape_cast %118 : vector<8xf32> to vector<8x1xf32>
    %120 = tpu.reciprocal %119 {approx = true} : vector<8x1xf32> -> vector<8x1xf32>
    %121 = arith.truncf %117 : vector<8x8xf32> to vector<8x8xbf16>
    %cst_97 = arith.constant dense<0.000000e+00> : vector<8x8xf32>
    %122 = tpu.matmul %121, %103, %cst_97 {dimension_numbers = #tpu.dot_dimension_numbers<[1], [0], [0], [1], [0, 0, 1, 1], [], []>} : vector<8x8xbf16>, vector<8x8xbf16>, vector<8x8xf32> -> vector<8x8xf32>
    %123 = vector.broadcast %120 : vector<8x1xf32> to vector<8x8xf32>
    %124 = arith.mulf %122, %123 : vector<8x8xf32>
    %c0_98 = arith.constant 0 : index
    %c0_99 = arith.constant 0 : index
    %125 = vector.load %arg17[%c0_98, %c0_99] : memref<8x32xf32, #tpu.memory_space<vmem>>, vector<8x32xf32>
    %126 = arith.truncf %124 : vector<8x8xf32> to vector<8x8xbf16>
    %c3_100 = arith.constant 3 : index
    %c0_101 = arith.constant 0 : index
    %c0_102 = arith.constant 0 : index
    %127 = vector.load %arg8[%c3_100, %c0_101, %c0_102] : memref<4x8x32xbf16, #tpu.memory_space<vmem>>, vector<1x8x32xbf16>
    %128 = vector.shape_cast %127 : vector<1x8x32xbf16> to vector<8x32xbf16>
    %cst_103 = arith.constant dense<0.000000e+00> : vector<8x32xf32>
    %129 = tpu.matmul %126, %128, %cst_103 {dimension_numbers = #tpu.dot_dimension_numbers<[1], [0], [0], [1], [0, 0, 1, 1], [], []>} : vector<8x8xbf16>, vector<8x32xbf16>, vector<8x32xf32> -> vector<8x32xf32>
    %130 = arith.addf %125, %129 : vector<8x32xf32>
    %c0_104 = arith.constant 0 : index
    %c0_105 = arith.constant 0 : index
    %131 = vector.load %arg17[%c0_104, %c0_105] : memref<8x32xf32, #tpu.memory_space<vmem>>, vector<8x32xf32>
    tpu.vector_store %arg17[%c0_104, %c0_105], %130 {strides = array<i32>} : memref<8x32xf32, #tpu.memory_space<vmem>>, vector<8x32xf32>,
    %c0_i32_106 = arith.constant 0 : i32
    %132 = arith.cmpi eq, %arg2, %c0_i32_106 : i32
    %133 = arith.extui %132 : i1 to i32
    %c0_i32_107 = arith.constant 0 : i32
    %134 = arith.cmpi ne, %133, %c0_i32_107 : i32
    scf.if %134 {
      %c0_108 = arith.constant 0 : index
      %c0_109 = arith.constant 0 : index
      %c0_110 = arith.constant 0 : index
      %135 = vector.load %arg3[%c0_108, %c0_109, %c0_110] : memref<1x8x32xf32, #tpu.memory_space<vmem>>, vector<1x8x32xf32>
      %136 = vector.shape_cast %135 : vector<1x8x32xf32> to vector<8x32xf32>
      %c0_111 = arith.constant 0 : index
      %c0_112 = arith.constant 0 : index
      %137 = vector.load %arg17[%c0_111, %c0_112] : memref<8x32xf32, #tpu.memory_space<vmem>>, vector<8x32xf32>
      %c0_113 = arith.constant 0 : index
      %c0_114 = arith.constant 0 : index
      %138 = vector.load %arg9[%c0_113, %c0_114] : memref<1x32xf32, #tpu.memory_space<vmem>>, vector<1x32xf32>
      %139 = vector.broadcast %138 : vector<1x32xf32> to vector<8x32xf32>
      %140 = arith.addf %137, %139 : vector<8x32xf32>
      %141 = arith.addf %136, %140 : vector<8x32xf32>
      %c0_115 = arith.constant 0 : index
      %c0_116 = arith.constant 0 : index
      %142 = vector.load %arg15[%c0_115, %c0_116] : memref<1x32xf32, #tpu.memory_space<vmem>>, vector<1x32xf32>
      %cst_117 = arith.constant dense<0.000000e+00> : vector<8xf32>
      %143 = vector.multi_reduction <add>, %141, %cst_117 [1] : vector<8x32xf32> to vector<8xf32>
      %144 = vector.shape_cast %143 : vector<8xf32> to vector<8x1xf32>
      %cst_118 = arith.constant 3.200000e+01 : f32
      %145 = vector.broadcast %cst_118 : f32 to vector<8x1xf32>
      %146 = arith.divf %144, %145 : vector<8x1xf32>
      %147 = vector.broadcast %146 : vector<8x1xf32> to vector<8x32xf32>
      %148 = arith.subf %141, %147 : vector<8x32xf32>
      %149 = arith.mulf %148, %148 : vector<8x32xf32>
      %cst_119 = arith.constant dense<0.000000e+00> : vector<8xf32>
      %150 = vector.multi_reduction <add>, %149, %cst_119 [1] : vector<8x32xf32> to vector<8xf32>
      %151 = vector.shape_cast %150 : vector<8xf32> to vector<8x1xf32>
      %cst_120 = arith.constant 3.200000e+01 : f32
      %152 = vector.broadcast %cst_120 : f32 to vector<8x1xf32>
      %153 = arith.divf %151, %152 : vector<8x1xf32>
      %cst_121 = arith.constant 9.99999974E-6 : f32
      %154 = vector.broadcast %cst_121 : f32 to vector<8x1xf32>
      %155 = arith.addf %153, %154 : vector<8x1xf32>
      %156 = math.rsqrt %155 : vector<8x1xf32>
      %157 = vector.broadcast %156 : vector<8x1xf32> to vector<8x32xf32>
      %158 = arith.mulf %148, %157 : vector<8x32xf32>
      %159 = vector.broadcast %142 : vector<1x32xf32> to vector<8x32xf32>
      %160 = arith.mulf %158, %159 : vector<8x32xf32>
      %161 = arith.truncf %160 : vector<8x32xf32> to vector<8x32xbf16>
      %c0_122 = arith.constant 0 : index
      %c0_123 = arith.constant 0 : index
      %162 = vector.load %arg10[%c0_122, %c0_123] : memref<32x64xbf16, #tpu.memory_space<vmem>>, vector<32x64xbf16>
      %cst_124 = arith.constant dense<0.000000e+00> : vector<8x64xf32>
      %163 = tpu.matmul %161, %162, %cst_124 {dimension_numbers = #tpu.dot_dimension_numbers<[1], [0], [0], [1], [0, 0, 1, 1], [], []>} : vector<8x32xbf16>, vector<32x64xbf16>, vector<8x64xf32> -> vector<8x64xf32>
      %c0_125 = arith.constant 0 : index
      %c0_126 = arith.constant 0 : index
      %164 = vector.load %arg11[%c0_125, %c0_126] : memref<1x64xf32, #tpu.memory_space<vmem>>, vector<1x64xf32>
      %165 = vector.broadcast %164 : vector<1x64xf32> to vector<8x64xf32>
      %166 = arith.addf %163, %165 : vector<8x64xf32>
      %cst_127 = arith.constant 0.000000e+00 : f32
      %167 = vector.broadcast %cst_127 : f32 to vector<8x64xf32>
      %168 = arith.maximumf %166, %167 : vector<8x64xf32>
      %169 = arith.truncf %168 : vector<8x64xf32> to vector<8x64xbf16>
      %c0_128 = arith.constant 0 : index
      %c0_129 = arith.constant 0 : index
      %170 = vector.load %arg12[%c0_128, %c0_129] : memref<64x32xbf16, #tpu.memory_space<vmem>>, vector<64x32xbf16>
      %cst_130 = arith.constant dense<0.000000e+00> : vector<8x32xf32>
      %171 = tpu.matmul %169, %170, %cst_130 {dimension_numbers = #tpu.dot_dimension_numbers<[1], [0], [0], [1], [0, 0, 1, 1], [], []>} : vector<8x64xbf16>, vector<64x32xbf16>, vector<8x32xf32> -> vector<8x32xf32>
      %c0_131 = arith.constant 0 : index
      %c0_132 = arith.constant 0 : index
      %172 = vector.load %arg13[%c0_131, %c0_132] : memref<1x32xf32, #tpu.memory_space<vmem>>, vector<1x32xf32>
      %173 = vector.broadcast %172 : vector<1x32xf32> to vector<8x32xf32>
      %174 = arith.addf %171, %173 : vector<8x32xf32>
      %175 = arith.addf %141, %174 : vector<8x32xf32>
      %c0_133 = arith.constant 0 : index
      %c0_134 = arith.constant 0 : index
      %c0_135 = arith.constant 0 : index
      %176 = vector.load %arg16[%c0_133, %c0_134, %c0_135] : memref<1x8x32xf32, #tpu.memory_space<vmem>>, vector<1x8x32xf32>
      %177 = vector.shape_cast %176 : vector<1x8x32xf32> to vector<8x32xf32>
      %178 = vector.shape_cast %175 : vector<8x32xf32> to vector<1x8x32xf32>
      tpu.vector_store %arg16[%c0_133, %c0_134, %c0_135], %178 {strides = array<i32>} : memref<1x8x32xf32, #tpu.memory_space<vmem>>, vector<1x8x32xf32>,
    } else {
    }
    return
  }
  func.func @transform_0(%arg0: i32, %arg1: i32, %arg2: i32) -> (i32, i32, i32) {
    %c0_i32 = arith.constant 0 : i32
    %c0_i32_0 = arith.constant 0 : i32
    return %arg0, %arg1, %c0_i32 : i32, i32, i32
  }
  func.func @transform_1(%arg0: i32, %arg1: i32, %arg2: i32) -> (i32, i32, i32, i32) {
    %c0_i32 = arith.constant 0 : i32
    %c0_i32_0 = arith.constant 0 : i32
    %c0_i32_1 = arith.constant 0 : i32
    return %arg0, %arg2, %c0_i32, %c0_i32_0 : i32, i32, i32, i32
  }
  func.func @transform_2(%arg0: i32, %arg1: i32, %arg2: i32) -> (i32, i32, i32, i32) {
    %c0_i32 = arith.constant 0 : i32
    %c0_i32_0 = arith.constant 0 : i32
    %c0_i32_1 = arith.constant 0 : i32
    return %arg0, %arg2, %c0_i32, %c0_i32_0 : i32, i32, i32, i32
  }
  func.func @transform_3(%arg0: i32, %arg1: i32, %arg2: i32) -> (i32, i32, i32) {
    %c0_i32 = arith.constant 0 : i32
    %c0_i32_0 = arith.constant 0 : i32
    %c0_i32_1 = arith.constant 0 : i32
    return %arg2, %c0_i32, %c0_i32_0 : i32, i32, i32
  }
  func.func @transform_4(%arg0: i32, %arg1: i32, %arg2: i32) -> (i32, i32, i32) {
    %c0_i32 = arith.constant 0 : i32
    %c0_i32_0 = arith.constant 0 : i32
    %c0_i32_1 = arith.constant 0 : i32
    return %arg2, %c0_i32, %c0_i32_0 : i32, i32, i32
  }
  func.func @transform_5(%arg0: i32, %arg1: i32, %arg2: i32) -> (i32, i32, i32) {
    %c0_i32 = arith.constant 0 : i32
    %c0_i32_0 = arith.constant 0 : i32
    %c0_i32_1 = arith.constant 0 : i32
    return %arg2, %c0_i32, %c0_i32_0 : i32, i32, i32
  }
  func.func @transform_6(%arg0: i32, %arg1: i32, %arg2: i32) -> (i32, i32) {
    %c0_i32 = arith.constant 0 : i32
    %c0_i32_0 = arith.constant 0 : i32
    %c0_i32_1 = arith.constant 0 : i32
    return %c0_i32, %c0_i32_0 : i32, i32
  }
  func.func @transform_7(%arg0: i32, %arg1: i32, %arg2: i32) -> (i32, i32) {
    %c0_i32 = arith.constant 0 : i32
    %c0_i32_0 = arith.constant 0 : i32
    %c0_i32_1 = arith.constant 0 : i32
    return %c0_i32, %c0_i32_0 : i32, i32
  }
  func.func @transform_8(%arg0: i32, %arg1: i32, %arg2: i32) -> (i32, i32) {
    %c0_i32 = arith.constant 0 : i32
    %c0_i32_0 = arith.constant 0 : i32
    %c0_i32_1 = arith.constant 0 : i32
    return %c0_i32, %c0_i32_0 : i32, i32
  }
  func.func @transform_9(%arg0: i32, %arg1: i32, %arg2: i32) -> (i32, i32) {
    %c0_i32 = arith.constant 0 : i32
    %c0_i32_0 = arith.constant 0 : i32
    %c0_i32_1 = arith.constant 0 : i32
    return %c0_i32, %c0_i32_0 : i32, i32
  }
  func.func @transform_10(%arg0: i32, %arg1: i32, %arg2: i32) -> (i32, i32) {
    %c0_i32 = arith.constant 0 : i32
    %c0_i32_0 = arith.constant 0 : i32
    %c0_i32_1 = arith.constant 0 : i32
    return %c0_i32, %c0_i32_0 : i32, i32
  }
  func.func @transform_11(%arg0: i32, %arg1: i32, %arg2: i32) -> (i32, i32) {
    %c0_i32 = arith.constant 0 : i32
    %c0_i32_0 = arith.constant 0 : i32
    %c0_i32_1 = arith.constant 0 : i32
    return %c0_i32, %c0_i32_0 : i32, i32
  }
  func.func @transform_12(%arg0: i32, %arg1: i32, %arg2: i32) -> (i32, i32) {
    %c0_i32 = arith.constant 0 : i32
    %c0_i32_0 = arith.constant 0 : i32
    %c0_i32_1 = arith.constant 0 : i32
    return %c0_i32, %c0_i32_0 : i32, i32
  }
  func.func @transform_13(%arg0: i32, %arg1: i32, %arg2: i32) -> (i32, i32, i32) {
    %c0_i32 = arith.constant 0 : i32
    %c0_i32_0 = arith.constant 0 : i32
    return %arg0, %arg1, %c0_i32 : i32, i32, i32
  }
}

</mosaic_0001>

<llo_original>
// kernel: tpu_custom_call.1
$region0: #{tpu_custom_call.1}
  #allocation0 [shape = 'u32[]', space=smem, size = 0x4, offset = 0x4, fixed_abs, tag = 'smem constant byte address 0x4 - core index']
  #allocation1 [shape = 'u32[144,128]{1,0:T(1,128)}', space=vmem, size = 0x12000, scoped, tag = 'internal scratch']
  #allocation2 [shape = 'f32[8,32]{1,0:T(8,128)}', space=vmem, size = 0x1000, scoped, tag = 'scratch operand']
  #allocation3 [shape = 'bf16[8,32]{1,0:T(8,128)(2,1)}', space=vmem, size = 0x800, scoped, tag = 'scratch operand']
  %s0 = inlined_call_operand.vmem [shape: f32[2,8,32], index: 0, kind: input, shape index: {}]
  %s1 = inlined_call_operand.vmem [shape: bf16[2,4,8,8], index: 1, kind: input, shape index: {}]
  %s2 = inlined_call_operand.vmem [shape: bf16[2,4,8,8], index: 2, kind: input, shape index: {}]
  %s3 = inlined_call_operand.vmem [shape: bf16[4,32,8], index: 3, kind: input, shape index: {}]
  %s4 = inlined_call_operand.vmem [shape: f32[4,1,8], index: 4, kind: input, shape index: {}]
  %s5 = inlined_call_operand.vmem [shape: bf16[4,8,32], index: 5, kind: input, shape index: {}]
  %s6 = inlined_call_operand.vmem [shape: f32[1,32], index: 6, kind: input, shape index: {}]
  %s7 = inlined_call_operand.vmem [shape: bf16[32,64], index: 7, kind: input, shape index: {}]
  %s8 = inlined_call_operand.vmem [shape: f32[1,64], index: 8, kind: input, shape index: {}]
  %s9 = inlined_call_operand.vmem [shape: bf16[64,32], index: 9, kind: input, shape index: {}]
  %s10 = inlined_call_operand.vmem [shape: f32[1,32], index: 10, kind: input, shape index: {}]
  %s11 = inlined_call_operand.vmem [shape: f32[1,32], index: 11, kind: input, shape index: {}]
  %s12 = inlined_call_operand.vmem [shape: f32[1,32], index: 12, kind: input, shape index: {}]
  %s13 = inlined_call_operand.hbm [shape: f32[2,8,32], index: 13, kind: output, shape index: {}]
  %s14 = sld [smem:[#allocation0]]
  $region93: #{tpu_custom_call.1} parent=0
    _
  %s16 = ssub.s32 1, %s14
  %s17 = scalar_select 0, %s16, %s14
  $region1: #{tpu_custom_call.1} parent=0
    #allocation4 [shape = 'u8[8192]{0}', space=vmem, size = 0x2000, scoped, tag = 'output window, operand 0']
    #allocation5 [shape = 's32[2]{0}', space=sflag, size = 0x8, scoped, tag = 'scoped memory for tpu_custom_call.1']
    %18 = vsyncpa [#allocation5], 0
    %s19 = scalar_lea.sflag [#allocation5], 1
    %20 = vsyncpa %s19, 0
    loop: start=0, step=1, limit=4
    $region2: #{tpu_custom_call.1} parent=1 // loop_pre_header
      _
    $region3: #{tpu_custom_call.1} parent=1 // loop_header
      %s22 = sphi 0, %s26
      %p23 = scmp.ge.s32.totalorder %s22, 4
      %s29 = sphi 0, %s48
      %s30 = sphi 0, %s44
      %s31 = sphi 0, %s40
      %s32 = sphi 0, %s29
      %s33 = sphi 0, %s30
      %s34 = sphi 0, %s31
      %s35 = sphi 0, %s32
      %s36 = sphi 0, %s33
      %s37 = sphi 0, %s34
      %s53 = sphi 0, %s55
      %s56 = sphi 0, %s53
      %s57 = sphi 0, %s56
      %s73 = sphi 0, %s57
      %s81 = sphi 0, %s83
      %s84 = sphi 0, %s81
      %s85 = sphi 0, %s84
      %s101 = sphi 0, %s85
      %s109 = sphi 0, %s111
      %s112 = sphi 0, %s109
      %s113 = sphi 0, %s112
      %s129 = sphi 0, %s113
      %s135 = sphi 0, %s137
      %s138 = sphi 0, %s135
      %s139 = sphi 0, %s138
      %s155 = sphi 0, %s139
      %s161 = sphi 0, %s163
      %s164 = sphi 0, %s161
      %s165 = sphi 0, %s164
      %s181 = sphi 0, %s165
      %s187 = sphi 0, %s189
      %s190 = sphi 0, %s187
      %s191 = sphi 0, %s190
      %s207 = sphi 0, %s191
      %s211 = sphi 0, %s211
      %s213 = sphi 0, %s211
      %s214 = sphi 0, %s213
      %s228 = sphi 0, %s214
      %s232 = sphi 0, %s232
      %s234 = sphi 0, %s232
      %s235 = sphi 0, %s234
      %s249 = sphi 0, %s235
      %s253 = sphi 0, %s253
      %s255 = sphi 0, %s253
      %s256 = sphi 0, %s255
      %s270 = sphi 0, %s256
      %s274 = sphi 0, %s274
      %s276 = sphi 0, %s274
      %s277 = sphi 0, %s276
      %s291 = sphi 0, %s277
      %s295 = sphi 0, %s295
      %s297 = sphi 0, %s295
      %s298 = sphi 0, %s297
      %s312 = sphi 0, %s298
      %s316 = sphi 0, %s316
      %s318 = sphi 0, %s316
      %s319 = sphi 0, %s318
      %s333 = sphi 0, %s319
      %s337 = sphi 0, %s337
      %s339 = sphi 0, %s337
      %s340 = sphi 0, %s339
      %s354 = sphi 0, %s340
      %s362 = sphi 0, %s364
      %s365 = sphi 0, %s362
      %s366 = sphi 0, %s365
      %s382 = sphi 0, %s366
    $region4: #{tpu_custom_call.1} parent=1 // loop_header_branch
      %25 = sbr.rel (%p23) target = $region8
    $region5: #{tpu_custom_call.1} parent=1 // loop_body
      %s27 = ssub.s32 %s22, 1
      %s28 = ssub.s32 %s22, 2
      %s38 = sadd.s32 1, %s31
      %p39 = scmp.ge.s32.totalorder %s38, 1
      %s40 = scalar_select %p39, 0, %s38
      %s41 = sadd.s32 1, %s30
      %s42 = scalar_select %p39, %s41, %s30
      %p43 = scmp.ge.s32.totalorder %s42, 1
      %s44 = scalar_select %p43, 0, %s42
      %s45 = sadd.s32 1, %s29
      %s46 = scalar_select %p43, %s45, %s29
      %p47 = scmp.ge.s32.totalorder %s46, 2
      %s48 = scalar_select %p47, 0, %s46
      %s49 = ssub.s32 %s29, %s48
      %s50 = ssub.s32 %s30, %s44
      %s51 = sor.u32 %s49, %s50
      %p52 = scmp.eq.s32.totalorder %s51, 0
      %s54 = sadd.s32 %s53, 1
      %s55 = scalar_select %p52, %s53, %s54
      %p58 = pneg %p52
      %p59 = scmp.eq.s32.totalorder %s22, 1
      %p60 = por %p58, %p59
      %p61 = scmp.ne.s32.totalorder %s53, %s56
      %p62 = scmp.eq.s32.totalorder %s22, 0
      %p63 = por %p61, %p62
      %p64 = scmp.ne.s32.totalorder %s53, %s56
      %p65 = scmp.eq.s32.totalorder %s27, 1
      %p66 = por %p64, %p65
      %p67 = scmp.ne.s32.totalorder %s56, %s57
      %p68 = scmp.eq.s32.totalorder %s27, 0
      %p69 = por %p67, %p68
      %p70 = scmp.ne.s32.totalorder %s56, %s57
      %p71 = scmp.eq.s32.totalorder %s28, 1
      %p72 = por %p70, %p71
      %p74 = scmp.ne.s32.totalorder %s57, %s73
      %p75 = scmp.eq.s32.totalorder %s28, 0
      %p76 = por %p74, %p75
      %s77 = ssub.s32 %s29, %s48
      %s78 = ssub.s32 %s31, %s40
      %s79 = sor.u32 %s77, %s78
      %p80 = scmp.eq.s32.totalorder %s79, 0
      %s82 = sadd.s32 %s81, 1
      %s83 = scalar_select %p80, %s81, %s82
      %p86 = pneg %p80
      %p87 = scmp.eq.s32.totalorder %s22, 1
      %p88 = por %p86, %p87
      %p89 = scmp.ne.s32.totalorder %s81, %s84
      %p90 = scmp.eq.s32.totalorder %s22, 0
      %p91 = por %p89, %p90
      %p92 = scmp.ne.s32.totalorder %s81, %s84
      %p93 = scmp.eq.s32.totalorder %s27, 1
      %p94 = por %p92, %p93
      %p95 = scmp.ne.s32.totalorder %s84, %s85
      %p96 = scmp.eq.s32.totalorder %s27, 0
      %p97 = por %p95, %p96
      %p98 = scmp.ne.s32.totalorder %s84, %s85
      %p99 = scmp.eq.s32.totalorder %s28, 1
      %p100 = por %p98, %p99
      %p102 = scmp.ne.s32.totalorder %s85, %s101
      %p103 = scmp.eq.s32.totalorder %s28, 0
      %p104 = por %p102, %p103
      %s105 = ssub.s32 %s29, %s48
      %s106 = ssub.s32 %s31, %s40
      %s107 = sor.u32 %s105, %s106
      %p108 = scmp.eq.s32.totalorder %s107, 0
      %s110 = sadd.s32 %s109, 1
      %s111 = scalar_select %p108, %s109, %s110
      %p114 = pneg %p108
      %p115 = scmp.eq.s32.totalorder %s22, 1
      %p116 = por %p114, %p115
      %p117 = scmp.ne.s32.totalorder %s109, %s112
      %p118 = scmp.eq.s32.totalorder %s22, 0
      %p119 = por %p117, %p118
      %p120 = scmp.ne.s32.totalorder %s109, %s112
      %p121 = scmp.eq.s32.totalorder %s27, 1
      %p122 = por %p120, %p121
      %p123 = scmp.ne.s32.totalorder %s112, %s113
      %p124 = scmp.eq.s32.totalorder %s27, 0
      %p125 = por %p123, %p124
      %p126 = scmp.ne.s32.totalorder %s112, %s113
      %p127 = scmp.eq.s32.totalorder %s28, 1
      %p128 = por %p126, %p127
      %p130 = scmp.ne.s32.totalorder %s113, %s129
      %p131 = scmp.eq.s32.totalorder %s28, 0
      %p132 = por %p130, %p131
      %s133 = ssub.s32 %s31, %s40
      %p134 = scmp.eq.s32.totalorder %s133, 0
      %s136 = sadd.s32 %s135, 1
      %s137 = scalar_select %p134, %s135, %s136
      %p140 = pneg %p134
      %p141 = scmp.eq.s32.totalorder %s22, 1
      %p142 = por %p140, %p141
      %p143 = scmp.ne.s32.totalorder %s135, %s138
      %p144 = scmp.eq.s32.totalorder %s22, 0
      %p145 = por %p143, %p144
      %p146 = scmp.ne.s32.totalorder %s135, %s138
      %p147 = scmp.eq.s32.totalorder %s27, 1
      %p148 = por %p146, %p147
      %p149 = scmp.ne.s32.totalorder %s138, %s139
      %p150 = scmp.eq.s32.totalorder %s27, 0
      %p151 = por %p149, %p150
      %p152 = scmp.ne.s32.totalorder %s138, %s139
      %p153 = scmp.eq.s32.totalorder %s28, 1
      %p154 = por %p152, %p153
      %p156 = scmp.ne.s32.totalorder %s139, %s155
      %p157 = scmp.eq.s32.totalorder %s28, 0
      %p158 = por %p156, %p157
      %s159 = ssub.s32 %s31, %s40
      %p160 = scmp.eq.s32.totalorder %s159, 0
      %s162 = sadd.s32 %s161, 1
      %s163 = scalar_select %p160, %s161, %s162
      %p166 = pneg %p160
      %p167 = scmp.eq.s32.totalorder %s22, 1
      %p168 = por %p166, %p167
      %p169 = scmp.ne.s32.totalorder %s161, %s164
      %p170 = scmp.eq.s32.totalorder %s22, 0
      %p171 = por %p169, %p170
      %p172 = scmp.ne.s32.totalorder %s161, %s164
      %p173 = scmp.eq.s32.totalorder %s27, 1
      %p174 = por %p172, %p173
      %p175 = scmp.ne.s32.totalorder %s164, %s165
      %p176 = scmp.eq.s32.totalorder %s27, 0
      %p177 = por %p175, %p176
      %p178 = scmp.ne.s32.totalorder %s164, %s165
      %p179 = scmp.eq.s32.totalorder %s28, 1
      %p180 = por %p178, %p179
      %p182 = scmp.ne.s32.totalorder %s165, %s181
      %p183 = scmp.eq.s32.totalorder %s28, 0
      %p184 = por %p182, %p183
      %s185 = ssub.s32 %s31, %s40
      %p186 = scmp.eq.s32.totalorder %s185, 0
      %s188 = sadd.s32 %s187, 1
      %s189 = scalar_select %p186, %s187, %s188
      %p192 = pneg %p186
      %p193 = scmp.eq.s32.totalorder %s22, 1
      %p194 = por %p192, %p193
      %p195 = scmp.ne.s32.totalorder %s187, %s190
      %p196 = scmp.eq.s32.totalorder %s22, 0
      %p197 = por %p195, %p196
      %p198 = scmp.ne.s32.totalorder %s187, %s190
      %p199 = scmp.eq.s32.totalorder %s27, 1
      %p200 = por %p198, %p199
      %p201 = scmp.ne.s32.totalorder %s190, %s191
      %p202 = scmp.eq.s32.totalorder %s27, 0
      %p203 = por %p201, %p202
      %p204 = scmp.ne.s32.totalorder %s190, %s191
      %p205 = scmp.eq.s32.totalorder %s28, 1
      %p206 = por %p204, %p205
      %p208 = scmp.ne.s32.totalorder %s191, %s207
      %p209 = scmp.eq.s32.totalorder %s28, 0
      %p210 = por %p208, %p209
      %s212 = sadd.s32 %s211, 1
      %p215 = scmp.eq.s32.totalorder %s22, 1
      %p216 = scmp.ne.s32.totalorder %s211, %s213
      %p217 = scmp.eq.s32.totalorder %s22, 0
      %p218 = por %p216, %p217
      %p219 = scmp.ne.s32.totalorder %s211, %s213
      %p220 = scmp.eq.s32.totalorder %s27, 1
      %p221 = por %p219, %p220
      %p222 = scmp.ne.s32.totalorder %s213, %s214
      %p223 = scmp.eq.s32.totalorder %s27, 0
      %p224 = por %p222, %p223
      %p225 = scmp.ne.s32.totalorder %s213, %s214
      %p226 = scmp.eq.s32.totalorder %s28, 1
      %p227 = por %p225, %p226
      %p229 = scmp.ne.s32.totalorder %s214, %s228
      %p230 = scmp.eq.s32.totalorder %s28, 0
      %p231 = por %p229, %p230
      %s233 = sadd.s32 %s232, 1
      %p236 = scmp.eq.s32.totalorder %s22, 1
      %p237 = scmp.ne.s32.totalorder %s232, %s234
      %p238 = scmp.eq.s32.totalorder %s22, 0
      %p239 = por %p237, %p238
      %p240 = scmp.ne.s32.totalorder %s232, %s234
      %p241 = scmp.eq.s32.totalorder %s27, 1
      %p242 = por %p240, %p241
      %p243 = scmp.ne.s32.totalorder %s234, %s235
      %p244 = scmp.eq.s32.totalorder %s27, 0
      %p245 = por %p243, %p244
      %p246 = scmp.ne.s32.totalorder %s234, %s235
      %p247 = scmp.eq.s32.totalorder %s28, 1
      %p248 = por %p246, %p247
      %p250 = scmp.ne.s32.totalorder %s235, %s249
      %p251 = scmp.eq.s32.totalorder %s28, 0
      %p252 = por %p250, %p251
      %s254 = sadd.s32 %s253, 1
      %p257 = scmp.eq.s32.totalorder %s22, 1
      %p258 = scmp.ne.s32.totalorder %s253, %s255
      %p259 = scmp.eq.s32.totalorder %s22, 0
      %p260 = por %p258, %p259
      %p261 = scmp.ne.s32.totalorder %s253, %s255
      %p262 = scmp.eq.s32.totalorder %s27, 1
      %p263 = por %p261, %p262
      %p264 = scmp.ne.s32.totalorder %s255, %s256
      %p265 = scmp.eq.s32.totalorder %s27, 0
      %p266 = por %p264, %p265
      %p267 = scmp.ne.s32.totalorder %s255, %s256
      %p268 = scmp.eq.s32.totalorder %s28, 1
      %p269 = por %p267, %p268
      %p271 = scmp.ne.s32.totalorder %s256, %s270
      %p272 = scmp.eq.s32.totalorder %s28, 0
      %p273 = por %p271, %p272
      %s275 = sadd.s32 %s274, 1
      %p278 = scmp.eq.s32.totalorder %s22, 1
      %p279 = scmp.ne.s32.totalorder %s274, %s276
      %p280 = scmp.eq.s32.totalorder %s22, 0
      %p281 = por %p279, %p280
      %p282 = scmp.ne.s32.totalorder %s274, %s276
      %p283 = scmp.eq.s32.totalorder %s27, 1
      %p284 = por %p282, %p283
      %p285 = scmp.ne.s32.totalorder %s276, %s277
      %p286 = scmp.eq.s32.totalorder %s27, 0
      %p287 = por %p285, %p286
      %p288 = scmp.ne.s32.totalorder %s276, %s277
      %p289 = scmp.eq.s32.totalorder %s28, 1
      %p290 = por %p288, %p289
      %p292 = scmp.ne.s32.totalorder %s277, %s291
      %p293 = scmp.eq.s32.totalorder %s28, 0
      %p294 = por %p292, %p293
      %s296 = sadd.s32 %s295, 1
      %p299 = scmp.eq.s32.totalorder %s22, 1
      %p300 = scmp.ne.s32.totalorder %s295, %s297
      %p301 = scmp.eq.s32.totalorder %s22, 0
      %p302 = por %p300, %p301
      %p303 = scmp.ne.s32.totalorder %s295, %s297
      %p304 = scmp.eq.s32.totalorder %s27, 1
      %p305 = por %p303, %p304
      %p306 = scmp.ne.s32.totalorder %s297, %s298
      %p307 = scmp.eq.s32.totalorder %s27, 0
      %p308 = por %p306, %p307
      %p309 = scmp.ne.s32.totalorder %s297, %s298
      %p310 = scmp.eq.s32.totalorder %s28, 1
      %p311 = por %p309, %p310
      %p313 = scmp.ne.s32.totalorder %s298, %s312
      %p314 = scmp.eq.s32.totalorder %s28, 0
      %p315 = por %p313, %p314
      %s317 = sadd.s32 %s316, 1
      %p320 = scmp.eq.s32.totalorder %s22, 1
      %p321 = scmp.ne.s32.totalorder %s316, %s318
      %p322 = scmp.eq.s32.totalorder %s22, 0
      %p323 = por %p321, %p322
      %p324 = scmp.ne.s32.totalorder %s316, %s318
      %p325 = scmp.eq.s32.totalorder %s27, 1
      %p326 = por %p324, %p325
      %p327 = scmp.ne.s32.totalorder %s318, %s319
      %p328 = scmp.eq.s32.totalorder %s27, 0
      %p329 = por %p327, %p328
      %p330 = scmp.ne.s32.totalorder %s318, %s319
      %p331 = scmp.eq.s32.totalorder %s28, 1
      %p332 = por %p330, %p331
      %p334 = scmp.ne.s32.totalorder %s319, %s333
      %p335 = scmp.eq.s32.totalorder %s28, 0
      %p336 = por %p334, %p335
      %s338 = sadd.s32 %s337, 1
      %p341 = scmp.eq.s32.totalorder %s22, 1
      %p342 = scmp.ne.s32.totalorder %s337, %s339
      %p343 = scmp.eq.s32.totalorder %s22, 0
      %p344 = por %p342, %p343
      %p345 = scmp.ne.s32.totalorder %s337, %s339
      %p346 = scmp.eq.s32.totalorder %s27, 1
      %p347 = por %p345, %p346
      %p348 = scmp.ne.s32.totalorder %s339, %s340
      %p349 = scmp.eq.s32.totalorder %s27, 0
      %p350 = por %p348, %p349
      %p351 = scmp.ne.s32.totalorder %s339, %s340
      %p352 = scmp.eq.s32.totalorder %s28, 1
      %p353 = por %p351, %p352
      %p355 = scmp.ne.s32.totalorder %s340, %s354
      %p356 = scmp.eq.s32.totalorder %s28, 0
      %p357 = por %p355, %p356
      %s358 = ssub.s32 %s29, %s48
      %s359 = ssub.s32 %s30, %s44
      %s360 = sor.u32 %s358, %s359
      %p361 = scmp.eq.s32.totalorder %s360, 0
      %s363 = sadd.s32 %s362, 1
      %s364 = scalar_select %p361, %s362, %s363
      %p367 = pneg %p361
      %p368 = scmp.eq.s32.totalorder %s22, 1
      %p369 = por %p367, %p368
      %p370 = scmp.ne.s32.totalorder %s362, %s365
      %p371 = scmp.eq.s32.totalorder %s22, 0
      %p372 = por %p370, %p371
      %p373 = scmp.ne.s32.totalorder %s362, %s365
      %p374 = scmp.eq.s32.totalorder %s27, 1
      %p375 = por %p373, %p374
      %p376 = scmp.ne.s32.totalorder %s365, %s366
      %p377 = scmp.eq.s32.totalorder %s27, 0
      %p378 = por %p376, %p377
      %p379 = scmp.ne.s32.totalorder %s365, %s366
      %p380 = scmp.eq.s32.totalorder %s28, 1
      %p381 = por %p379, %p380
      %p383 = scmp.ne.s32.totalorder %s366, %s382
      %p384 = scmp.eq.s32.totalorder %s28, 0
      %p385 = por %p383, %p384
      %p386 = scmp.le.s32.totalorder 1, %s22
      %p387 = scmp.lt.s32.totalorder %s22, 3
      %p388 = pnand %p386, %p387
      %p389 = pneg %p388
      // Predicated region
      $region9: #{tpu_custom_call.1} parent=5 // pred_check
        _
      $region10: #{tpu_custom_call.1} parent=5 // pred_check_branch
        %391 = sbr.rel (%p388) target = $region12
      $region11: #{tpu_custom_call.1} parent=5 // pred_region
        %s392 = ssub.s32 %s22, 1
        // Predicated region
        $region13: #{tpu_custom_call.1} parent=11 // pred_check
          %p393 = pneg %p151
        $region14: #{tpu_custom_call.1} parent=11 // pred_check_branch
          %395 = sbr.rel (%p393) target = $region16
        $region15: #{tpu_custom_call.1} parent=11 // pred_region
          %s396 = smul.u32 4, %s34
          %p397 = scmp.lt.s32.totalorder %s396, 3
          %s398 = scalar_select %p397, %s396, 3
          %s399 = smul.addr %s398, 4
          %s400 = smul.addr %s399, 4
          %s401 = scalar_lea.vmem %s3, %s400
          %s402 = smul.u32 4, %s34
        $region16: #{tpu_custom_call.1} parent=11 // pred_fallthru
          _
        // Predicated region
        $region17: #{tpu_custom_call.1} parent=11 // pred_check
          %p403 = pneg %p177
        $region18: #{tpu_custom_call.1} parent=11 // pred_check_branch
          %405 = sbr.rel (%p403) target = $region20
        $region19: #{tpu_custom_call.1} parent=11 // pred_region
          %s406 = smul.u32 4, %s34
          %p407 = scmp.lt.s32.totalorder %s406, 3
          %s408 = scalar_select %p407, %s406, 3
          %s409 = scalar_lea.vmem %s4, %s408
          %s410 = smul.u32 4, %s34
        $region20: #{tpu_custom_call.1} parent=11 // pred_fallthru
          _
        // Predicated region
        $region21: #{tpu_custom_call.1} parent=11 // pred_check
          %p411 = pneg %p203
        $region22: #{tpu_custom_call.1} parent=11 // pred_check_branch
          %413 = sbr.rel (%p411) target = $region24
        $region23: #{tpu_custom_call.1} parent=11 // pred_region
          %s414 = smul.u32 4, %s34
          %p415 = scmp.lt.s32.totalorder %s414, 3
          %s416 = scalar_select %p415, %s414, 3
          %s417 = smul.addr %s416, 4
          %s418 = scalar_lea.vmem %s5, %s417
          %s419 = smul.u32 4, %s34
        $region24: #{tpu_custom_call.1} parent=11 // pred_fallthru
          _
        // Predicated region
        $region25: #{tpu_custom_call.1} parent=11 // pred_check
          %p420 = pneg %p224
        $region26: #{tpu_custom_call.1} parent=11 // pred_check_branch
          %422 = sbr.rel (%p420) target = $region28
        $region27: #{tpu_custom_call.1} parent=11 // pred_region
          _
        $region28: #{tpu_custom_call.1} parent=11 // pred_fallthru
          _
        // Predicated region
        $region29: #{tpu_custom_call.1} parent=11 // pred_check
          %p423 = pneg %p245
        $region30: #{tpu_custom_call.1} parent=11 // pred_check_branch
          %425 = sbr.rel (%p423) target = $region32
        $region31: #{tpu_custom_call.1} parent=11 // pred_region
          _
        $region32: #{tpu_custom_call.1} parent=11 // pred_fallthru
          _
        // Predicated region
        $region33: #{tpu_custom_call.1} parent=11 // pred_check
          %p426 = pneg %p266
        $region34: #{tpu_custom_call.1} parent=11 // pred_check_branch
          %428 = sbr.rel (%p426) target = $region36
        $region35: #{tpu_custom_call.1} parent=11 // pred_region
          _
        $region36: #{tpu_custom_call.1} parent=11 // pred_fallthru
          _
        // Predicated region
        $region37: #{tpu_custom_call.1} parent=11 // pred_check
          %p429 = pneg %p287
        $region38: #{tpu_custom_call.1} parent=11 // pred_check_branch
          %431 = sbr.rel (%p429) target = $region40
        $region39: #{tpu_custom_call.1} parent=11 // pred_region
          _
        $region40: #{tpu_custom_call.1} parent=11 // pred_fallthru
          _
        // Predicated region
        $region41: #{tpu_custom_call.1} parent=11 // pred_check
          %p432 = pneg %p308
        $region42: #{tpu_custom_call.1} parent=11 // pred_check_branch
          %434 = sbr.rel (%p432) target = $region44
        $region43: #{tpu_custom_call.1} parent=11 // pred_region
          _
        $region44: #{tpu_custom_call.1} parent=11 // pred_fallthru
          _
        // Predicated region
        $region45: #{tpu_custom_call.1} parent=11 // pred_check
          %p435 = pneg %p329
        $region46: #{tpu_custom_call.1} parent=11 // pred_check_branch
          %437 = sbr.rel (%p435) target = $region48
        $region47: #{tpu_custom_call.1} parent=11 // pred_region
          _
        $region48: #{tpu_custom_call.1} parent=11 // pred_fallthru
          _
        // Predicated region
        $region49: #{tpu_custom_call.1} parent=11 // pred_check
          %p438 = pneg %p350
        $region50: #{tpu_custom_call.1} parent=11 // pred_check_branch
          %440 = sbr.rel (%p438) target = $region52
        $region51: #{tpu_custom_call.1} parent=11 // pred_region
          _
        $region52: #{tpu_custom_call.1} parent=11 // pred_fallthru
          _
      $region12: #{tpu_custom_call.1} parent=5 // pred_fallthru
        _
      %p441 = scmp.lt.s32.totalorder %s22, 2
      // Predicated region
      $region53: #{tpu_custom_call.1} parent=5 // pred_check
        %p442 = pneg %p441
      $region54: #{tpu_custom_call.1} parent=5 // pred_check_branch
        %444 = sbr.rel (%p442) target = $region56
      $region55: #{tpu_custom_call.1} parent=5 // pred_region
        // Predicated region
        $region57: #{tpu_custom_call.1} parent=55 // pred_check
          %p445 = pneg %p63
        $region58: #{tpu_custom_call.1} parent=55 // pred_check_branch
          %447 = sbr.rel (%p445) target = $region60
        $region59: #{tpu_custom_call.1} parent=55 // pred_region
          %p448 = scmp.lt.s32.totalorder %s29, 1
          %s449 = scalar_select %p448, %s29, 1
          %p450 = scmp.lt.s32.totalorder %s30, 0
          %s451 = scalar_select %p450, %s30, 0
          %s452 = sadd.s32 %s451, %s449
          %s453 = smul.addr %s452, 8
          %s454 = scalar_lea.vmem %s0, %s453
        $region60: #{tpu_custom_call.1} parent=55 // pred_fallthru
          _
        // Predicated region
        $region61: #{tpu_custom_call.1} parent=55 // pred_check
          %p455 = pneg %p91
        $region62: #{tpu_custom_call.1} parent=55 // pred_check_branch
          %457 = sbr.rel (%p455) target = $region64
        $region63: #{tpu_custom_call.1} parent=55 // pred_region
          %s458 = smul.u32 4, %s31
          %p459 = scmp.lt.s32.totalorder %s29, 1
          %s460 = scalar_select %p459, %s29, 1
          %p461 = scmp.lt.s32.totalorder %s458, 3
          %s462 = scalar_select %p461, %s458, 3
          %s463 = smul.addr %s460, 4
          %s464 = sadd.s32 %s462, %s463
          %s465 = smul.addr %s464, 4
          %s466 = scalar_lea.vmem %s1, %s465
          %s467 = smul.u32 4, %s31
        $region64: #{tpu_custom_call.1} parent=55 // pred_fallthru
          _
        // Predicated region
        $region65: #{tpu_custom_call.1} parent=55 // pred_check
          %p468 = pneg %p119
        $region66: #{tpu_custom_call.1} parent=55 // pred_check_branch
          %470 = sbr.rel (%p468) target = $region68
        $region67: #{tpu_custom_call.1} parent=55 // pred_region
          %s471 = smul.u32 4, %s31
          %p472 = scmp.lt.s32.totalorder %s29, 1
          %s473 = scalar_select %p472, %s29, 1
          %p474 = scmp.lt.s32.totalorder %s471, 3
          %s475 = scalar_select %p474, %s471, 3
          %s476 = smul.addr %s473, 4
          %s477 = sadd.s32 %s475, %s476
          %s478 = smul.addr %s477, 4
          %s479 = scalar_lea.vmem %s2, %s478
          %s480 = smul.u32 4, %s31
        $region68: #{tpu_custom_call.1} parent=55 // pred_fallthru
          _
      $region56: #{tpu_custom_call.1} parent=5 // pred_fallthru
        _
      %p481 = scmp.le.s32.totalorder 1, %s22
      %p482 = scmp.lt.s32.totalorder %s22, 3
      %p483 = pnand %p481, %p482
      %p484 = pneg %p483
      // Predicated region
      $region69: #{tpu_custom_call.1} parent=5 // pred_check
        _
      $region70: #{tpu_custom_call.1} parent=5 // pred_check_branch
        %486 = sbr.rel (%p483) target = $region72
      $region71: #{tpu_custom_call.1} parent=5 // pred_region
        %s487 = ssub.s32 %s22, 1
        %p488 = scmp.lt.s32.totalorder %s32, 1
        %s489 = scalar_select %p488, %s32, 1
        %p490 = scmp.lt.s32.totalorder %s33, 0
        %s491 = scalar_select %p490, %s33, 0
        %s492 = sadd.s32 %s491, %s489
        %s493 = smul.addr %s492, 8
        %s494 = scalar_lea.vmem %s0, %s493
        %p495 = pneg %p69
        %p496 = pneg %p66
        %s497 = smul.u32 4, %s34
        %p498 = scmp.lt.s32.totalorder %s32, 1
        %s499 = scalar_select %p498, %s32, 1
        %p500 = scmp.lt.s32.totalorder %s497, 3
        %s501 = scalar_select %p500, %s497, 3
        %s502 = smul.addr %s499, 4
        %s503 = sadd.s32 %s501, %s502
        %s504 = smul.addr %s503, 4
        %s505 = scalar_lea.vmem %s1, %s504
        %p506 = pneg %p97
        %p507 = pneg %p94
        %s508 = smul.u32 4, %s34
        %p509 = scmp.lt.s32.totalorder %s32, 1
        %s510 = scalar_select %p509, %s32, 1
        %p511 = scmp.lt.s32.totalorder %s508, 3
        %s512 = scalar_select %p511, %s508, 3
        %s513 = smul.addr %s510, 4
        %s514 = sadd.s32 %s512, %s513
        %s515 = smul.addr %s514, 4
        %s516 = scalar_lea.vmem %s2, %s515
        %p517 = pneg %p125
        %p518 = pneg %p122
        %s519 = smul.u32 4, %s34
        %p520 = scmp.lt.s32.totalorder %s519, 3
        %s521 = scalar_select %p520, %s519, 3
        %s522 = smul.addr %s521, 4
        %s523 = smul.addr %s522, 4
        %s524 = scalar_lea.vmem %s3, %s523
        %p525 = pneg %p151
        %p526 = pneg %p148
        %s527 = smul.u32 4, %s34
        %p528 = scmp.lt.s32.totalorder %s527, 3
        %s529 = scalar_select %p528, %s527, 3
        %s530 = scalar_lea.vmem %s4, %s529
        %p531 = pneg %p177
        %p532 = pneg %p174
        %s533 = smul.u32 4, %s34
        %p534 = scmp.lt.s32.totalorder %s533, 3
        %s535 = scalar_select %p534, %s533, 3
        %s536 = smul.addr %s535, 4
        %s537 = scalar_lea.vmem %s5, %s536
        %p538 = pneg %p203
        %p539 = pneg %p200
        %p540 = pneg %p224
        %p541 = pneg %p221
        %p542 = pneg %p245
        %p543 = pneg %p242
        %p544 = pneg %p266
        %p545 = pneg %p263
        %p546 = pneg %p287
        %p547 = pneg %p284
        %p548 = pneg %p308
        %p549 = pneg %p305
        %p550 = pneg %p329
        %p551 = pneg %p326
        %p552 = pneg %p350
        %p553 = pneg %p347
        %p554 = pneg %p378
        %p555 = pneg %p375
        %s556 = sand.u32 %s365, 1
        %s557 = scalar_lea.sflag [#allocation5], %s556
        %s558 = sand.u32 %s365, 1
        %s559 = smul.addr %s558, 8
        %s560 = scalar_lea.vmem [#allocation4], %s559
        %p561 = scmp.lt.s32.totalorder %s32, 1
        %s562 = scalar_select %p561, %s32, 1
        %p563 = scmp.lt.s32.totalorder %s33, 0
        %s564 = scalar_select %p563, %s33, 0
        %s565 = sadd.s32 %s564, %s562
        %s566 = smul.addr %s565, 8
        %s567 = scalar_lea.vmem %s0, %s566
        %s568 = smul.u32 4, %s34
        %p569 = scmp.lt.s32.totalorder %s32, 1
        %s570 = scalar_select %p569, %s32, 1
        %p571 = scmp.lt.s32.totalorder %s568, 3
        %s572 = scalar_select %p571, %s568, 3
        %s573 = smul.addr %s570, 4
        %s574 = sadd.s32 %s572, %s573
        %s575 = smul.addr %s574, 4
        %s576 = scalar_lea.vmem %s1, %s575
        %s577 = smul.u32 4, %s34
        %s578 = smul.u32 4, %s34
        %p579 = scmp.lt.s32.totalorder %s32, 1
        %s580 = scalar_select %p579, %s32, 1
        %p581 = scmp.lt.s32.totalorder %s578, 3
        %s582 = scalar_select %p581, %s578, 3
        %s583 = smul.addr %s580, 4
        %s584 = sadd.s32 %s582, %s583
        %s585 = smul.addr %s584, 4
        %s586 = scalar_lea.vmem %s2, %s585
        %s587 = smul.u32 4, %s34
        %s588 = smul.u32 4, %s34
        %p589 = scmp.lt.s32.totalorder %s588, 3
        %s590 = scalar_select %p589, %s588, 3
        %s591 = smul.addr %s590, 4
        %s592 = smul.addr %s591, 4
        %s593 = scalar_lea.vmem %s3, %s592
        %s594 = smul.u32 4, %s34
        %s595 = smul.u32 4, %s34
        %p596 = scmp.lt.s32.totalorder %s595, 3
        %s597 = scalar_select %p596, %s595, 3
        %s598 = scalar_lea.vmem %s4, %s597
        %s599 = smul.u32 4, %s34
        %s600 = smul.u32 4, %s34
        %p601 = scmp.lt.s32.totalorder %s600, 3
        %s602 = scalar_select %p601, %s600, 3
        %s603 = smul.addr %s602, 4
        %s604 = scalar_lea.vmem %s5, %s603
        %s605 = smul.u32 4, %s34
        %p607 = scmp.eq.s32.totalorder %s34, 0
        // Predicated region
        $region73: #{tpu_custom_call.1} parent=71 // pred_check
          %p608 = pneg %p607
        $region74: #{tpu_custom_call.1} parent=71 // pred_check_branch
          %610 = sbr.rel (%p608) target = $region76
        $region75: #{tpu_custom_call.1} parent=71 // pred_region
          %vm611 = vcmask 261120
          %612 = vst.msk [vmem:[#allocation2] sm:$0xff] %vm611, 0.0
          %v613 = vld [vmem:[%s567] sm:$0xff]
          %v614 = vld [vmem:[%s11] sm:$0x1]
          %v615 = vsel %vm611, %v613, 0.0
          %616 = vadd.xlane.f32.xlu0 %v615
          %v617 = vpop.xlane.xlu0 %616
          %v618 = vrcp.pop 32.0
          %v619 = vmul.f32 %v617, %v618
          %v620 = vsub.f32 %v613, %v619
          %v621 = vmul.f32 %v620, %v620
          %v622 = vsel %vm611, %v621, 0.0
          %623 = vadd.xlane.f32.xlu0 %v622
          %v624 = vpop.xlane.xlu0 %623
          %v625 = vmul.f32 %v624, %v618
          %v626 = vadd.f32 %v625, 1e-05
          %v627 = vrsqrt.pop %v626
          %v628 = vmul.f32 %v620, %v627
          %v630 = vlaneseq
          %v631 = vshrl.u32 %v630, 7
          %v632 = vsub.s32 0, %v631
          %v633 = vrot.slane %v614, %v632
          %v635 = vmul.f32 %v628, %v633
          %v636 = vpack.c.bf16 %v635, %v635
          %vm637 = vcmask 257024
          %638 = vst.msk [vmem:[#allocation3] sm:$0xf] %vm637, %v636
        $region76: #{tpu_custom_call.1} parent=71 // pred_fallthru
          _
        %v639 = vld [vmem:[#allocation3] sm:$0xf]
        %v640 = vld [vmem:[%s576] sm:$0xf]
        %v641 = vld [vmem:[%s586] sm:$0xf]
        %v642 = vld [vmem:[%s593] sm:$0xf]
        %v643 = vld [vmem:[%s593 + $0x4] sm:$0xf]
        %v644 = vld [vmem:[%s593 + $0x8] sm:$0xf]
        %v645 = vld [vmem:[%s593 + $0xc] sm:$0xf]
        %v646 = vld [vmem:[%s598] sm:$0x1]
        %v648 = vlaneseq
        %v649 = vshrl.u32 %v648, 7
        %v650 = vsub.s32 0, %v649
        %v651 = vrot.slane %v646, %v650
        %v657 = vunpack.c.l.b16 %v642
        %v658 = vunpack.c.l.b16 %v643
        %v659 = vunpack.c.l.b16 %v644
        %v660 = vunpack.c.l.b16 %v645
        %v661 = vpack.c.b16 %v658, %v657
        %v662 = vpack.c.b16 %v660, %v659
        %vm665 = vcmask 261120
        %v667 = vsel %vm665, %v639, 0
        %669 = vmatprep.subr.bf16.mxu0 0
        %670 = vmatpush1.bf16.msra.mxu0 %v661
        %671 = vmatprep.subr.bf16.mxu0 0
        %672 = vmatpush1.bf16.msra.mxu0 %v662
        %673 = vmatprep.subr.bf16.mxu0 0
        %674 = vmatpush1.bf16.msra.mxu0 0
        %675 = vmatprep.subr.bf16.mxu0 0
        %676 = vmatpush1.bf16.msra.mxu0 0
        %677 = vmatprep.subr.bf16.mxu0 0
        %678 = vmatpush1.bf16.msra.mxu0 0
        %679 = vmatprep.subr.bf16.mxu0 0
        %680 = vmatpush1.bf16.msra.mxu0 0
        %681 = vmatprep.subr.bf16.mxu0 0
        %682 = vmatpush1.bf16.msra.mxu0 0
        %683 = vmatprep.subr.bf16.mxu0 0
        %684 = vmatpush1.bf16.msra.mxu0 0
        %685 = vmatprep.subr.bf16.mxu0 0
        %686 = vmatpush1.bf16.msra.mxu0 0
        %687 = vmatprep.subr.bf16.mxu0 0
        %688 = vmatpush1.bf16.msra.mxu0 0
        %689 = vmatprep.subr.bf16.mxu0 0
        %690 = vmatpush1.bf16.msra.mxu0 0
        %691 = vmatprep.subr.bf16.mxu0 0
        %692 = vmatpush1.bf16.msra.mxu0 0
        %693 = vmatprep.subr.bf16.mxu0 0
        %694 = vmatpush1.bf16.msra.mxu0 0
        %695 = vmatprep.subr.bf16.mxu0 0
        %696 = vmatpush1.bf16.msra.mxu0 0
        %697 = vmatprep.subr.bf16.mxu0 0
        %698 = vmatpush1.bf16.msra.mxu0 0
        %699 = vmatprep.subr.bf16.mxu0 0
        %700 = vmatpush1.bf16.msra.mxu0 0
        %701 = vmatprep.mubr.bf16.mxu0 0
        %702 = vmatmul.mubr.bf16.gmra.mrb[0].mxu0 %v667
        %v703 = vpop.f32.mrb[0].mxu0
        %v704 = vadd.f32 %v651, %v703
        %v705 = vpop.f32.mrb[0].mxu0
        %v706 = vpop.f32.mrb[0].mxu0
        %v707 = vpop.f32.mrb[0].mxu0
        %708 = vdwg.mxu0
        %v709 = vpack.c.bf16 %v704, %v704
        %vm710 = vcmask 64512
        %v712 = vsel %vm710, %v709, 0
        %vm714 = vcmask 1043456
        %v716 = vsel %vm714, %v640, 0
        %718 = vmatprep.subr.bf16.mxu0 0
        %719 = vmatpush1.bf16.msra.mxu0 %v716
        %720 = vmatprep.subr.bf16.mxu0 0
        %721 = vmatpush1.bf16.msra.mxu0 0
        %722 = vmatprep.subr.bf16.mxu0 0
        %723 = vmatpush1.bf16.msra.mxu0 0
        %724 = vmatprep.subr.bf16.mxu0 0
        %725 = vmatpush1.bf16.msra.mxu0 0
        %726 = vmatprep.subr.bf16.mxu0 0
        %727 = vmatpush1.bf16.msra.mxu0 0
        %728 = vmatprep.subr.bf16.mxu0 0
        %729 = vmatpush1.bf16.msra.mxu0 0
        %730 = vmatprep.subr.bf16.mxu0 0
        %731 = vmatpush1.bf16.msra.mxu0 0
        %732 = vmatprep.subr.bf16.mxu0 0
        %733 = vmatpush1.bf16.msra.mxu0 0
        %734 = vmatprep.subr.bf16.mxu0 0
        %735 = vmatpush1.bf16.msra.mxu0 0
        %736 = vmatprep.subr.bf16.mxu0 0
        %737 = vmatpush1.bf16.msra.mxu0 0
        %738 = vmatprep.subr.bf16.mxu0 0
        %739 = vmatpush1.bf16.msra.mxu0 0
        %740 = vmatprep.subr.bf16.mxu0 0
        %741 = vmatpush1.bf16.msra.mxu0 0
        %742 = vmatprep.subr.bf16.mxu0 0
        %743 = vmatpush1.bf16.msra.mxu0 0
        %744 = vmatprep.subr.bf16.mxu0 0
        %745 = vmatpush1.bf16.msra.mxu0 0
        %746 = vmatprep.subr.bf16.mxu0 0
        %747 = vmatpush1.bf16.msra.mxu0 0
        %748 = vmatprep.subr.bf16.mxu0 0
        %749 = vmatpush1.bf16.msra.mxu0 0
        %750 = vmatprep.mubr.bf16.mxu0 0
        %751 = vmatmul.mubr.bf16.gmra.mrb[0].mxu0 %v712
        %v752 = vpop.f32.mrb[0].mxu0
        %v753 = vadd.f32 0.0, %v752
        %v754 = vpop.f32.mrb[0].mxu0
        %v755 = vpop.f32.mrb[0].mxu0
        %v756 = vpop.f32.mrb[0].mxu0
        %757 = vdwg.mxu0
        %v758 = vsel %vm710, %v753, -inf
        %759 = vmax.xlane.f32.xlu0 %v758
        %v760 = vpop.xlane.xlu0 %759
        %v761 = vsub.f32 %v753, %v760
        %v762 = vmul.f32 %v761, 1.442695
        %v763 = vpow.pop %v762
        %v764 = vsel %vm710, %v763, 0.0
        %765 = vadd.xlane.f32.xlu0 %v764
        %v766 = vpop.xlane.xlu0 %765
        %v767 = vrcp.pop %v766
        %v768 = vpack.c.bf16 %v763, %v763
        %v770 = vsel %vm710, %v768, 0
        %v773 = vsel %vm714, %v641, 0
        %775 = vmatprep.subr.bf16.mxu0 0
        %776 = vmatpush1.bf16.msra.mxu0 %v773
        %777 = vmatprep.subr.bf16.mxu0 0
        %778 = vmatpush1.bf16.msra.mxu0 0
        %779 = vmatprep.subr.bf16.mxu0 0
        %780 = vmatpush1.bf16.msra.mxu0 0
        %781 = vmatprep.subr.bf16.mxu0 0
        %782 = vmatpush1.bf16.msra.mxu0 0
        %783 = vmatprep.subr.bf16.mxu0 0
        %784 = vmatpush1.bf16.msra.mxu0 0
        %785 = vmatprep.subr.bf16.mxu0 0
        %786 = vmatpush1.bf16.msra.mxu0 0
        %787 = vmatprep.subr.bf16.mxu0 0
        %788 = vmatpush1.bf16.msra.mxu0 0
        %789 = vmatprep.subr.bf16.mxu0 0
        %790 = vmatpush1.bf16.msra.mxu0 0
        %791 = vmatprep.subr.bf16.mxu0 0
        %792 = vmatpush1.bf16.msra.mxu0 0
        %793 = vmatprep.subr.bf16.mxu0 0
        %794 = vmatpush1.bf16.msra.mxu0 0
        %795 = vmatprep.subr.bf16.mxu0 0
        %796 = vmatpush1.bf16.msra.mxu0 0
        %797 = vmatprep.subr.bf16.mxu0 0
        %798 = vmatpush1.bf16.msra.mxu0 0
        %799 = vmatprep.subr.bf16.mxu0 0
        %800 = vmatpush1.bf16.msra.mxu0 0
        %801 = vmatprep.subr.bf16.mxu0 0
        %802 = vmatpush1.bf16.msra.mxu0 0
        %803 = vmatprep.subr.bf16.mxu0 0
        %804 = vmatpush1.bf16.msra.mxu0 0
        %805 = vmatprep.subr.bf16.mxu0 0
        %806 = vmatpush1.bf16.msra.mxu0 0
        %807 = vmatprep.mubr.bf16.mxu0 0
        %808 = vmatmul.mubr.bf16.gmra.mrb[0].mxu0 %v770
        %v809 = vpop.f32.mrb[0].mxu0
        %v810 = vadd.f32 0.0, %v809
        %v811 = vpop.f32.mrb[0].mxu0
        %v812 = vpop.f32.mrb[0].mxu0
        %v813 = vpop.f32.mrb[0].mxu0
        %814 = vdwg.mxu0
        %v815 = vmul.f32 %v810, %v767
        %v816 = vld [vmem:[#allocation2] sm:$0xff]
        %v817 = vpack.c.bf16 %v815, %v815
        %v818 = vld [vmem:[%s604] sm:$0xf]
        %v820 = vsel %vm710, %v817, 0
        %v823 = vsel %vm714, %v818, 0
        %825 = vmatprep.subr.bf16.mxu0 0
        %826 = vmatpush1.bf16.msra.mxu0 %v823
        %827 = vmatprep.subr.bf16.mxu0 0
        %828 = vmatpush1.bf16.msra.mxu0 0
        %829 = vmatprep.subr.bf16.mxu0 0
        %830 = vmatpush1.bf16.msra.mxu0 0
        %831 = vmatprep.subr.bf16.mxu0 0
        %832 = vmatpush1.bf16.msra.mxu0 0
        %833 = vmatprep.subr.bf16.mxu0 0
        %834 = vmatpush1.bf16.msra.mxu0 0
        %835 = vmatprep.subr.bf16.mxu0 0
        %836 = vmatpush1.bf16.msra.mxu0 0
        %837 = vmatprep.subr.bf16.mxu0 0
        %838 = vmatpush1.bf16.msra.mxu0 0
        %839 = vmatprep.subr.bf16.mxu0 0
        %840 = vmatpush1.bf16.msra.mxu0 0
        %841 = vmatprep.subr.bf16.mxu0 0
        %842 = vmatpush1.bf16.msra.mxu0 0
        %843 = vmatprep.subr.bf16.mxu0 0
        %844 = vmatpush1.bf16.msra.mxu0 0
        %845 = vmatprep.subr.bf16.mxu0 0
        %846 = vmatpush1.bf16.msra.mxu0 0
        %847 = vmatprep.subr.bf16.mxu0 0
        %848 = vmatpush1.bf16.msra.mxu0 0
        %849 = vmatprep.subr.bf16.mxu0 0
        %850 = vmatpush1.bf16.msra.mxu0 0
        %851 = vmatprep.subr.bf16.mxu0 0
        %852 = vmatpush1.bf16.msra.mxu0 0
        %853 = vmatprep.subr.bf16.mxu0 0
        %854 = vmatpush1.bf16.msra.mxu0 0
        %855 = vmatprep.subr.bf16.mxu0 0
        %856 = vmatpush1.bf16.msra.mxu0 0
        %857 = vmatprep.mubr.bf16.mxu0 0
        %858 = vmatmul.mubr.bf16.gmra.mrb[0].mxu0 %v820
        %v859 = vpop.f32.mrb[0].mxu0
        %v860 = vadd.f32 0.0, %v859
        %v861 = vpop.f32.mrb[0].mxu0
        %v862 = vpop.f32.mrb[0].mxu0
        %v863 = vpop.f32.mrb[0].mxu0
        %864 = vdwg.mxu0
        %v865 = vadd.f32 %v816, %v860
        %866 = vst.msk [vmem:[#allocation2] sm:$0xff] %vm665, %v865
        %s867 = scalar_lea.vmem %s576, 4
        %v868 = vld [vmem:[%s867] sm:$0xf]
        %s869 = scalar_lea.vmem %s586, 4
        %v870 = vld [vmem:[%s869] sm:$0xf]
        %s871 = scalar_lea.vmem %s593, 16
        %v872 = vld [vmem:[%s871] sm:$0xf]
        %v873 = vld [vmem:[%s871 + $0x4] sm:$0xf]
        %v874 = vld [vmem:[%s871 + $0x8] sm:$0xf]
        %v875 = vld [vmem:[%s871 + $0xc] sm:$0xf]
        %s876 = scalar_lea.vmem %s598, 1
        %v877 = vld [vmem:[%s876] sm:$0x1]
        %v879 = vlaneseq
        %v880 = vshrl.u32 %v879, 7
        %v881 = vsub.s32 0, %v880
        %v882 = vrot.slane %v877, %v881
        %v888 = vunpack.c.l.b16 %v872
        %v889 = vunpack.c.l.b16 %v873
        %v890 = vunpack.c.l.b16 %v874
        %v891 = vunpack.c.l.b16 %v875
        %v892 = vpack.c.b16 %v889, %v888
        %v893 = vpack.c.b16 %v891, %v890
        %896 = vmatprep.subr.bf16.mxu0 0
        %897 = vmatpush1.bf16.msra.mxu0 %v892
        %898 = vmatprep.subr.bf16.mxu0 0
        %899 = vmatpush1.bf16.msra.mxu0 %v893
        %900 = vmatprep.subr.bf16.mxu0 0
        %901 = vmatpush1.bf16.msra.mxu0 0
        %902 = vmatprep.subr.bf16.mxu0 0
        %903 = vmatpush1.bf16.msra.mxu0 0
        %904 = vmatprep.subr.bf16.mxu0 0
        %905 = vmatpush1.bf16.msra.mxu0 0
        %906 = vmatprep.subr.bf16.mxu0 0
        %907 = vmatpush1.bf16.msra.mxu0 0
        %908 = vmatprep.subr.bf16.mxu0 0
        %909 = vmatpush1.bf16.msra.mxu0 0
        %910 = vmatprep.subr.bf16.mxu0 0
        %911 = vmatpush1.bf16.msra.mxu0 0
        %912 = vmatprep.subr.bf16.mxu0 0
        %913 = vmatpush1.bf16.msra.mxu0 0
        %914 = vmatprep.subr.bf16.mxu0 0
        %915 = vmatpush1.bf16.msra.mxu0 0
        %916 = vmatprep.subr.bf16.mxu0 0
        %917 = vmatpush1.bf16.msra.mxu0 0
        %918 = vmatprep.subr.bf16.mxu0 0
        %919 = vmatpush1.bf16.msra.mxu0 0
        %920 = vmatprep.subr.bf16.mxu0 0
        %921 = vmatpush1.bf16.msra.mxu0 0
        %922 = vmatprep.subr.bf16.mxu0 0
        %923 = vmatpush1.bf16.msra.mxu0 0
        %924 = vmatprep.subr.bf16.mxu0 0
        %925 = vmatpush1.bf16.msra.mxu0 0
        %926 = vmatprep.subr.bf16.mxu0 0
        %927 = vmatpush1.bf16.msra.mxu0 0
        %928 = vmatprep.mubr.bf16.mxu0 0
        %929 = vmatmul.mubr.bf16.gmra.mrb[0].mxu0 %v667
        %v930 = vpop.f32.mrb[0].mxu0
        %v931 = vadd.f32 %v882, %v930
        %v932 = vpop.f32.mrb[0].mxu0
        %v933 = vpop.f32.mrb[0].mxu0
        %v934 = vpop.f32.mrb[0].mxu0
        %935 = vdwg.mxu0
        %v936 = vpack.c.bf16 %v931, %v931
        %v938 = vsel %vm710, %v936, 0
        %v941 = vsel %vm714, %v868, 0
        %943 = vmatprep.subr.bf16.mxu0 0
        %944 = vmatpush1.bf16.msra.mxu0 %v941
        %945 = vmatprep.subr.bf16.mxu0 0
        %946 = vmatpush1.bf16.msra.mxu0 0
        %947 = vmatprep.subr.bf16.mxu0 0
        %948 = vmatpush1.bf16.msra.mxu0 0
        %949 = vmatprep.subr.bf16.mxu0 0
        %950 = vmatpush1.bf16.msra.mxu0 0
        %951 = vmatprep.subr.bf16.mxu0 0
        %952 = vmatpush1.bf16.msra.mxu0 0
        %953 = vmatprep.subr.bf16.mxu0 0
        %954 = vmatpush1.bf16.msra.mxu0 0
        %955 = vmatprep.subr.bf16.mxu0 0
        %956 = vmatpush1.bf16.msra.mxu0 0
        %957 = vmatprep.subr.bf16.mxu0 0
        %958 = vmatpush1.bf16.msra.mxu0 0
        %959 = vmatprep.subr.bf16.mxu0 0
        %960 = vmatpush1.bf16.msra.mxu0 0
        %961 = vmatprep.subr.bf16.mxu0 0
        %962 = vmatpush1.bf16.msra.mxu0 0
        %963 = vmatprep.subr.bf16.mxu0 0
        %964 = vmatpush1.bf16.msra.mxu0 0
        %965 = vmatprep.subr.bf16.mxu0 0
        %966 = vmatpush1.bf16.msra.mxu0 0
        %967 = vmatprep.subr.bf16.mxu0 0
        %968 = vmatpush1.bf16.msra.mxu0 0
        %969 = vmatprep.subr.bf16.mxu0 0
        %970 = vmatpush1.bf16.msra.mxu0 0
        %971 = vmatprep.subr.bf16.mxu0 0
        %972 = vmatpush1.bf16.msra.mxu0 0
        %973 = vmatprep.subr.bf16.mxu0 0
        %974 = vmatpush1.bf16.msra.mxu0 0
        %975 = vmatprep.mubr.bf16.mxu0 0
        %976 = vmatmul.mubr.bf16.gmra.mrb[0].mxu0 %v938
        %v977 = vpop.f32.mrb[0].mxu0
        %v978 = vadd.f32 0.0, %v977
        %v979 = vpop.f32.mrb[0].mxu0
        %v980 = vpop.f32.mrb[0].mxu0
        %v981 = vpop.f32.mrb[0].mxu0
        %982 = vdwg.mxu0
        %v983 = vsel %vm710, %v978, -inf
        %984 = vmax.xlane.f32.xlu0 %v983
        %v985 = vpop.xlane.xlu0 %984
        %v986 = vsub.f32 %v978, %v985
        %v987 = vmul.f32 %v986, 1.442695
        %v988 = vpow.pop %v987
        %v989 = vsel %vm710, %v988, 0.0
        %990 = vadd.xlane.f32.xlu0 %v989
        %v991 = vpop.xlane.xlu0 %990
        %v992 = vrcp.pop %v991
        %v993 = vpack.c.bf16 %v988, %v988
        %v995 = vsel %vm710, %v993, 0
        %v998 = vsel %vm714, %v870, 0
        %1000 = vmatprep.subr.bf16.mxu0 0
        %1001 = vmatpush1.bf16.msra.mxu0 %v998
        %1002 = vmatprep.subr.bf16.mxu0 0
        %1003 = vmatpush1.bf16.msra.mxu0 0
        %1004 = vmatprep.subr.bf16.mxu0 0
        %1005 = vmatpush1.bf16.msra.mxu0 0
        %1006 = vmatprep.subr.bf16.mxu0 0
        %1007 = vmatpush1.bf16.msra.mxu0 0
        %1008 = vmatprep.subr.bf16.mxu0 0
        %1009 = vmatpush1.bf16.msra.mxu0 0
        %1010 = vmatprep.subr.bf16.mxu0 0
        %1011 = vmatpush1.bf16.msra.mxu0 0
        %1012 = vmatprep.subr.bf16.mxu0 0
        %1013 = vmatpush1.bf16.msra.mxu0 0
        %1014 = vmatprep.subr.bf16.mxu0 0
        %1015 = vmatpush1.bf16.msra.mxu0 0
        %1016 = vmatprep.subr.bf16.mxu0 0
        %1017 = vmatpush1.bf16.msra.mxu0 0
        %1018 = vmatprep.subr.bf16.mxu0 0
        %1019 = vmatpush1.bf16.msra.mxu0 0
        %1020 = vmatprep.subr.bf16.mxu0 0
        %1021 = vmatpush1.bf16.msra.mxu0 0
        %1022 = vmatprep.subr.bf16.mxu0 0
        %1023 = vmatpush1.bf16.msra.mxu0 0
        %1024 = vmatprep.subr.bf16.mxu0 0
        %1025 = vmatpush1.bf16.msra.mxu0 0
        %1026 = vmatprep.subr.bf16.mxu0 0
        %1027 = vmatpush1.bf16.msra.mxu0 0
        %1028 = vmatprep.subr.bf16.mxu0 0
        %1029 = vmatpush1.bf16.msra.mxu0 0
        %1030 = vmatprep.subr.bf16.mxu0 0
        %1031 = vmatpush1.bf16.msra.mxu0 0
        %1032 = vmatprep.mubr.bf16.mxu0 0
        %1033 = vmatmul.mubr.bf16.gmra.mrb[0].mxu0 %v995
        %v1034 = vpop.f32.mrb[0].mxu0
        %v1035 = vadd.f32 0.0, %v1034
        %v1036 = vpop.f32.mrb[0].mxu0
        %v1037 = vpop.f32.mrb[0].mxu0
        %v1038 = vpop.f32.mrb[0].mxu0
        %1039 = vdwg.mxu0
        %v1040 = vmul.f32 %v1035, %v992
        %v1041 = vld [vmem:[#allocation2] sm:$0xff]
        %v1042 = vpack.c.bf16 %v1040, %v1040
        %s1043 = scalar_lea.vmem %s604, 4
        %v1044 = vld [vmem:[%s1043] sm:$0xf]
        %v1046 = vsel %vm710, %v1042, 0
        %v1049 = vsel %vm714, %v1044, 0
        %1051 = vmatprep.subr.bf16.mxu0 0
        %1052 = vmatpush1.bf16.msra.mxu0 %v1049
        %1053 = vmatprep.subr.bf16.mxu0 0
        %1054 = vmatpush1.bf16.msra.mxu0 0
        %1055 = vmatprep.subr.bf16.mxu0 0
        %1056 = vmatpush1.bf16.msra.mxu0 0
        %1057 = vmatprep.subr.bf16.mxu0 0
        %1058 = vmatpush1.bf16.msra.mxu0 0
        %1059 = vmatprep.subr.bf16.mxu0 0
        %1060 = vmatpush1.bf16.msra.mxu0 0
        %1061 = vmatprep.subr.bf16.mxu0 0
        %1062 = vmatpush1.bf16.msra.mxu0 0
        %1063 = vmatprep.subr.bf16.mxu0 0
        %1064 = vmatpush1.bf16.msra.mxu0 0
        %1065 = vmatprep.subr.bf16.mxu0 0
        %1066 = vmatpush1.bf16.msra.mxu0 0
        %1067 = vmatprep.subr.bf16.mxu0 0
        %1068 = vmatpush1.bf16.msra.mxu0 0
        %1069 = vmatprep.subr.bf16.mxu0 0
        %1070 = vmatpush1.bf16.msra.mxu0 0
        %1071 = vmatprep.subr.bf16.mxu0 0
        %1072 = vmatpush1.bf16.msra.mxu0 0
        %1073 = vmatprep.subr.bf16.mxu0 0
        %1074 = vmatpush1.bf16.msra.mxu0 0
        %1075 = vmatprep.subr.bf16.mxu0 0
        %1076 = vmatpush1.bf16.msra.mxu0 0
        %1077 = vmatprep.subr.bf16.mxu0 0
        %1078 = vmatpush1.bf16.msra.mxu0 0
        %1079 = vmatprep.subr.bf16.mxu0 0
        %1080 = vmatpush1.bf16.msra.mxu0 0
        %1081 = vmatprep.subr.bf16.mxu0 0
        %1082 = vmatpush1.bf16.msra.mxu0 0
        %1083 = vmatprep.mubr.bf16.mxu0 0
        %1084 = vmatmul.mubr.bf16.gmra.mrb[0].mxu0 %v1046
        %v1085 = vpop.f32.mrb[0].mxu0
        %v1086 = vadd.f32 0.0, %v1085
        %v1087 = vpop.f32.mrb[0].mxu0
        %v1088 = vpop.f32.mrb[0].mxu0
        %v1089 = vpop.f32.mrb[0].mxu0
        %1090 = vdwg.mxu0
        %v1091 = vadd.f32 %v1041, %v1086
        %1092 = vst.msk [vmem:[#allocation2] sm:$0xff] %vm665, %v1091
        %s1093 = scalar_lea.vmem %s576, 8
        %v1094 = vld [vmem:[%s1093] sm:$0xf]
        %s1095 = scalar_lea.vmem %s586, 8
        %v1096 = vld [vmem:[%s1095] sm:$0xf]
        %s1097 = scalar_lea.vmem %s593, 32
        %v1098 = vld [vmem:[%s1097] sm:$0xf]
        %v1099 = vld [vmem:[%s1097 + $0x4] sm:$0xf]
        %v1100 = vld [vmem:[%s1097 + $0x8] sm:$0xf]
        %v1101 = vld [vmem:[%s1097 + $0xc] sm:$0xf]
        %s1102 = scalar_lea.vmem %s598, 2
        %v1103 = vld [vmem:[%s1102] sm:$0x1]
        %v1105 = vlaneseq
        %v1106 = vshrl.u32 %v1105, 7
        %v1107 = vsub.s32 0, %v1106
        %v1108 = vrot.slane %v1103, %v1107
        %v1114 = vunpack.c.l.b16 %v1098
        %v1115 = vunpack.c.l.b16 %v1099
        %v1116 = vunpack.c.l.b16 %v1100
        %v1117 = vunpack.c.l.b16 %v1101
        %v1118 = vpack.c.b16 %v1115, %v1114
        %v1119 = vpack.c.b16 %v1117, %v1116
        %1122 = vmatprep.subr.bf16.mxu0 0
        %1123 = vmatpush1.bf16.msra.mxu0 %v1118
        %1124 = vmatprep.subr.bf16.mxu0 0
        %1125 = vmatpush1.bf16.msra.mxu0 %v1119
        %1126 = vmatprep.subr.bf16.mxu0 0
        %1127 = vmatpush1.bf16.msra.mxu0 0
        %1128 = vmatprep.subr.bf16.mxu0 0
        %1129 = vmatpush1.bf16.msra.mxu0 0
        %1130 = vmatprep.subr.bf16.mxu0 0
        %1131 = vmatpush1.bf16.msra.mxu0 0
        %1132 = vmatprep.subr.bf16.mxu0 0
        %1133 = vmatpush1.bf16.msra.mxu0 0
        %1134 = vmatprep.subr.bf16.mxu0 0
        %1135 = vmatpush1.bf16.msra.mxu0 0
        %1136 = vmatprep.subr.bf16.mxu0 0
        %1137 = vmatpush1.bf16.msra.mxu0 0
        %1138 = vmatprep.subr.bf16.mxu0 0
        %1139 = vmatpush1.bf16.msra.mxu0 0
        %1140 = vmatprep.subr.bf16.mxu0 0
        %1141 = vmatpush1.bf16.msra.mxu0 0
        %1142 = vmatprep.subr.bf16.mxu0 0
        %1143 = vmatpush1.bf16.msra.mxu0 0
        %1144 = vmatprep.subr.bf16.mxu0 0
        %1145 = vmatpush1.bf16.msra.mxu0 0
        %1146 = vmatprep.subr.bf16.mxu0 0
        %1147 = vmatpush1.bf16.msra.mxu0 0
        %1148 = vmatprep.subr.bf16.mxu0 0
        %1149 = vmatpush1.bf16.msra.mxu0 0
        %1150 = vmatprep.subr.bf16.mxu0 0
        %1151 = vmatpush1.bf16.msra.mxu0 0
        %1152 = vmatprep.subr.bf16.mxu0 0
        %1153 = vmatpush1.bf16.msra.mxu0 0
        %1154 = vmatprep.mubr.bf16.mxu0 0
        %1155 = vmatmul.mubr.bf16.gmra.mrb[0].mxu0 %v667
        %v1156 = vpop.f32.mrb[0].mxu0
        %v1157 = vadd.f32 %v1108, %v1156
        %v1158 = vpop.f32.mrb[0].mxu0
        %v1159 = vpop.f32.mrb[0].mxu0
        %v1160 = vpop.f32.mrb[0].mxu0
        %1161 = vdwg.mxu0
        %v1162 = vpack.c.bf16 %v1157, %v1157
        %v1164 = vsel %vm710, %v1162, 0
        %v1167 = vsel %vm714, %v1094, 0
        %1169 = vmatprep.subr.bf16.mxu0 0
        %1170 = vmatpush1.bf16.msra.mxu0 %v1167
        %1171 = vmatprep.subr.bf16.mxu0 0
        %1172 = vmatpush1.bf16.msra.mxu0 0
        %1173 = vmatprep.subr.bf16.mxu0 0
        %1174 = vmatpush1.bf16.msra.mxu0 0
        %1175 = vmatprep.subr.bf16.mxu0 0
        %1176 = vmatpush1.bf16.msra.mxu0 0
        %1177 = vmatprep.subr.bf16.mxu0 0
        %1178 = vmatpush1.bf16.msra.mxu0 0
        %1179 = vmatprep.subr.bf16.mxu0 0
        %1180 = vmatpush1.bf16.msra.mxu0 0
        %1181 = vmatprep.subr.bf16.mxu0 0
        %1182 = vmatpush1.bf16.msra.mxu0 0
        %1183 = vmatprep.subr.bf16.mxu0 0
        %1184 = vmatpush1.bf16.msra.mxu0 0
        %1185 = vmatprep.subr.bf16.mxu0 0
        %1186 = vmatpush1.bf16.msra.mxu0 0
        %1187 = vmatprep.subr.bf16.mxu0 0
        %1188 = vmatpush1.bf16.msra.mxu0 0
        %1189 = vmatprep.subr.bf16.mxu0 0
        %1190 = vmatpush1.bf16.msra.mxu0 0
        %1191 = vmatprep.subr.bf16.mxu0 0
        %1192 = vmatpush1.bf16.msra.mxu0 0
        %1193 = vmatprep.subr.bf16.mxu0 0
        %1194 = vmatpush1.bf16.msra.mxu0 0
        %1195 = vmatprep.subr.bf16.mxu0 0
        %1196 = vmatpush1.bf16.msra.mxu0 0
        %1197 = vmatprep.subr.bf16.mxu0 0
        %1198 = vmatpush1.bf16.msra.mxu0 0
        %1199 = vmatprep.subr.bf16.mxu0 0
        %1200 = vmatpush1.bf16.msra.mxu0 0
        %1201 = vmatprep.mubr.bf16.mxu0 0
        %1202 = vmatmul.mubr.bf16.gmra.mrb[0].mxu0 %v1164
        %v1203 = vpop.f32.mrb[0].mxu0
        %v1204 = vadd.f32 0.0, %v1203
        %v1205 = vpop.f32.mrb[0].mxu0
        %v1206 = vpop.f32.mrb[0].mxu0
        %v1207 = vpop.f32.mrb[0].mxu0
        %1208 = vdwg.mxu0
        %v1209 = vsel %vm710, %v1204, -inf
        %1210 = vmax.xlane.f32.xlu0 %v1209
        %v1211 = vpop.xlane.xlu0 %1210
        %v1212 = vsub.f32 %v1204, %v1211
        %v1213 = vmul.f32 %v1212, 1.442695
        %v1214 = vpow.pop %v1213
        %v1215 = vsel %vm710, %v1214, 0.0
        %1216 = vadd.xlane.f32.xlu0 %v1215
        %v1217 = vpop.xlane.xlu0 %1216
        %v1218 = vrcp.pop %v1217
        %v1219 = vpack.c.bf16 %v1214, %v1214
        %v1221 = vsel %vm710, %v1219, 0
        %v1224 = vsel %vm714, %v1096, 0
        %1226 = vmatprep.subr.bf16.mxu0 0
        %1227 = vmatpush1.bf16.msra.mxu0 %v1224
        %1228 = vmatprep.subr.bf16.mxu0 0
        %1229 = vmatpush1.bf16.msra.mxu0 0
        %1230 = vmatprep.subr.bf16.mxu0 0
        %1231 = vmatpush1.bf16.msra.mxu0 0
        %1232 = vmatprep.subr.bf16.mxu0 0
        %1233 = vmatpush1.bf16.msra.mxu0 0
        %1234 = vmatprep.subr.bf16.mxu0 0
        %1235 = vmatpush1.bf16.msra.mxu0 0
        %1236 = vmatprep.subr.bf16.mxu0 0
        %1237 = vmatpush1.bf16.msra.mxu0 0
        %1238 = vmatprep.subr.bf16.mxu0 0
        %1239 = vmatpush1.bf16.msra.mxu0 0
        %1240 = vmatprep.subr.bf16.mxu0 0
        %1241 = vmatpush1.bf16.msra.mxu0 0
        %1242 = vmatprep.subr.bf16.mxu0 0
        %1243 = vmatpush1.bf16.msra.mxu0 0
        %1244 = vmatprep.subr.bf16.mxu0 0
        %1245 = vmatpush1.bf16.msra.mxu0 0
        %1246 = vmatprep.subr.bf16.mxu0 0
        %1247 = vmatpush1.bf16.msra.mxu0 0
        %1248 = vmatprep.subr.bf16.mxu0 0
        %1249 = vmatpush1.bf16.msra.mxu0 0
        %1250 = vmatprep.subr.bf16.mxu0 0
        %1251 = vmatpush1.bf16.msra.mxu0 0
        %1252 = vmatprep.subr.bf16.mxu0 0
        %1253 = vmatpush1.bf16.msra.mxu0 0
        %1254 = vmatprep.subr.bf16.mxu0 0
        %1255 = vmatpush1.bf16.msra.mxu0 0
        %1256 = vmatprep.subr.bf16.mxu0 0
        %1257 = vmatpush1.bf16.msra.mxu0 0
        %1258 = vmatprep.mubr.bf16.mxu0 0
        %1259 = vmatmul.mubr.bf16.gmra.mrb[0].mxu0 %v1221
        %v1260 = vpop.f32.mrb[0].mxu0
        %v1261 = vadd.f32 0.0, %v1260
        %v1262 = vpop.f32.mrb[0].mxu0
        %v1263 = vpop.f32.mrb[0].mxu0
        %v1264 = vpop.f32.mrb[0].mxu0
        %1265 = vdwg.mxu0
        %v1266 = vmul.f32 %v1261, %v1218
        %v1267 = vld [vmem:[#allocation2] sm:$0xff]
        %v1268 = vpack.c.bf16 %v1266, %v1266
        %s1269 = scalar_lea.vmem %s604, 8
        %v1270 = vld [vmem:[%s1269] sm:$0xf]
        %v1272 = vsel %vm710, %v1268, 0
        %v1275 = vsel %vm714, %v1270, 0
        %1277 = vmatprep.subr.bf16.mxu0 0
        %1278 = vmatpush1.bf16.msra.mxu0 %v1275
        %1279 = vmatprep.subr.bf16.mxu0 0
        %1280 = vmatpush1.bf16.msra.mxu0 0
        %1281 = vmatprep.subr.bf16.mxu0 0
        %1282 = vmatpush1.bf16.msra.mxu0 0
        %1283 = vmatprep.subr.bf16.mxu0 0
        %1284 = vmatpush1.bf16.msra.mxu0 0
        %1285 = vmatprep.subr.bf16.mxu0 0
        %1286 = vmatpush1.bf16.msra.mxu0 0
        %1287 = vmatprep.subr.bf16.mxu0 0
        %1288 = vmatpush1.bf16.msra.mxu0 0
        %1289 = vmatprep.subr.bf16.mxu0 0
        %1290 = vmatpush1.bf16.msra.mxu0 0
        %1291 = vmatprep.subr.bf16.mxu0 0
        %1292 = vmatpush1.bf16.msra.mxu0 0
        %1293 = vmatprep.subr.bf16.mxu0 0
        %1294 = vmatpush1.bf16.msra.mxu0 0
        %1295 = vmatprep.subr.bf16.mxu0 0
        %1296 = vmatpush1.bf16.msra.mxu0 0
        %1297 = vmatprep.subr.bf16.mxu0 0
        %1298 = vmatpush1.bf16.msra.mxu0 0
        %1299 = vmatprep.subr.bf16.mxu0 0
        %1300 = vmatpush1.bf16.msra.mxu0 0
        %1301 = vmatprep.subr.bf16.mxu0 0
        %1302 = vmatpush1.bf16.msra.mxu0 0
        %1303 = vmatprep.subr.bf16.mxu0 0
        %1304 = vmatpush1.bf16.msra.mxu0 0
        %1305 = vmatprep.subr.bf16.mxu0 0
        %1306 = vmatpush1.bf16.msra.mxu0 0
        %1307 = vmatprep.subr.bf16.mxu0 0
        %1308 = vmatpush1.bf16.msra.mxu0 0
        %1309 = vmatprep.mubr.bf16.mxu0 0
        %1310 = vmatmul.mubr.bf16.gmra.mrb[0].mxu0 %v1272
        %v1311 = vpop.f32.mrb[0].mxu0
        %v1312 = vadd.f32 0.0, %v1311
        %v1313 = vpop.f32.mrb[0].mxu0
        %v1314 = vpop.f32.mrb[0].mxu0
        %v1315 = vpop.f32.mrb[0].mxu0
        %1316 = vdwg.mxu0
        %v1317 = vadd.f32 %v1267, %v1312
        %1318 = vst.msk [vmem:[#allocation2] sm:$0xff] %vm665, %v1317
        %s1319 = scalar_lea.vmem %s576, 12
        %v1320 = vld [vmem:[%s1319] sm:$0xf]
        %s1321 = scalar_lea.vmem %s586, 12
        %v1322 = vld [vmem:[%s1321] sm:$0xf]
        %s1323 = scalar_lea.vmem %s593, 48
        %v1324 = vld [vmem:[%s1323] sm:$0xf]
        %v1325 = vld [vmem:[%s1323 + $0x4] sm:$0xf]
        %v1326 = vld [vmem:[%s1323 + $0x8] sm:$0xf]
        %v1327 = vld [vmem:[%s1323 + $0xc] sm:$0xf]
        %s1328 = scalar_lea.vmem %s598, 3
        %v1329 = vld [vmem:[%s1328] sm:$0x1]
        %v1331 = vlaneseq
        %v1332 = vshrl.u32 %v1331, 7
        %v1333 = vsub.s32 0, %v1332
        %v1334 = vrot.slane %v1329, %v1333
        %v1340 = vunpack.c.l.b16 %v1324
        %v1341 = vunpack.c.l.b16 %v1325
        %v1342 = vunpack.c.l.b16 %v1326
        %v1343 = vunpack.c.l.b16 %v1327
        %v1344 = vpack.c.b16 %v1341, %v1340
        %v1345 = vpack.c.b16 %v1343, %v1342
        %1348 = vmatprep.subr.bf16.mxu0 0
        %1349 = vmatpush1.bf16.msra.mxu0 %v1344
        %1350 = vmatprep.subr.bf16.mxu0 0
        %1351 = vmatpush1.bf16.msra.mxu0 %v1345
        %1352 = vmatprep.subr.bf16.mxu0 0
        %1353 = vmatpush1.bf16.msra.mxu0 0
        %1354 = vmatprep.subr.bf16.mxu0 0
        %1355 = vmatpush1.bf16.msra.mxu0 0
        %1356 = vmatprep.subr.bf16.mxu0 0
        %1357 = vmatpush1.bf16.msra.mxu0 0
        %1358 = vmatprep.subr.bf16.mxu0 0
        %1359 = vmatpush1.bf16.msra.mxu0 0
        %1360 = vmatprep.subr.bf16.mxu0 0
        %1361 = vmatpush1.bf16.msra.mxu0 0
        %1362 = vmatprep.subr.bf16.mxu0 0
        %1363 = vmatpush1.bf16.msra.mxu0 0
        %1364 = vmatprep.subr.bf16.mxu0 0
        %1365 = vmatpush1.bf16.msra.mxu0 0
        %1366 = vmatprep.subr.bf16.mxu0 0
        %1367 = vmatpush1.bf16.msra.mxu0 0
        %1368 = vmatprep.subr.bf16.mxu0 0
        %1369 = vmatpush1.bf16.msra.mxu0 0
        %1370 = vmatprep.subr.bf16.mxu0 0
        %1371 = vmatpush1.bf16.msra.mxu0 0
        %1372 = vmatprep.subr.bf16.mxu0 0
        %1373 = vmatpush1.bf16.msra.mxu0 0
        %1374 = vmatprep.subr.bf16.mxu0 0
        %1375 = vmatpush1.bf16.msra.mxu0 0
        %1376 = vmatprep.subr.bf16.mxu0 0
        %1377 = vmatpush1.bf16.msra.mxu0 0
        %1378 = vmatprep.subr.bf16.mxu0 0
        %1379 = vmatpush1.bf16.msra.mxu0 0
        %1380 = vmatprep.mubr.bf16.mxu0 0
        %1381 = vmatmul.mubr.bf16.gmra.mrb[0].mxu0 %v667
        %v1382 = vpop.f32.mrb[0].mxu0
        %v1383 = vadd.f32 %v1334, %v1382
        %v1384 = vpop.f32.mrb[0].mxu0
        %v1385 = vpop.f32.mrb[0].mxu0
        %v1386 = vpop.f32.mrb[0].mxu0
        %1387 = vdwg.mxu0
        %v1388 = vpack.c.bf16 %v1383, %v1383
        %v1390 = vsel %vm710, %v1388, 0
        %v1393 = vsel %vm714, %v1320, 0
        %1395 = vmatprep.subr.bf16.mxu0 0
        %1396 = vmatpush1.bf16.msra.mxu0 %v1393
        %1397 = vmatprep.subr.bf16.mxu0 0
        %1398 = vmatpush1.bf16.msra.mxu0 0
        %1399 = vmatprep.subr.bf16.mxu0 0
        %1400 = vmatpush1.bf16.msra.mxu0 0
        %1401 = vmatprep.subr.bf16.mxu0 0
        %1402 = vmatpush1.bf16.msra.mxu0 0
        %1403 = vmatprep.subr.bf16.mxu0 0
        %1404 = vmatpush1.bf16.msra.mxu0 0
        %1405 = vmatprep.subr.bf16.mxu0 0
        %1406 = vmatpush1.bf16.msra.mxu0 0
        %1407 = vmatprep.subr.bf16.mxu0 0
        %1408 = vmatpush1.bf16.msra.mxu0 0
        %1409 = vmatprep.subr.bf16.mxu0 0
        %1410 = vmatpush1.bf16.msra.mxu0 0
        %1411 = vmatprep.subr.bf16.mxu0 0
        %1412 = vmatpush1.bf16.msra.mxu0 0
        %1413 = vmatprep.subr.bf16.mxu0 0
        %1414 = vmatpush1.bf16.msra.mxu0 0
        %1415 = vmatprep.subr.bf16.mxu0 0
        %1416 = vmatpush1.bf16.msra.mxu0 0
        %1417 = vmatprep.subr.bf16.mxu0 0
        %1418 = vmatpush1.bf16.msra.mxu0 0
        %1419 = vmatprep.subr.bf16.mxu0 0
        %1420 = vmatpush1.bf16.msra.mxu0 0
        %1421 = vmatprep.subr.bf16.mxu0 0
        %1422 = vmatpush1.bf16.msra.mxu0 0
        %1423 = vmatprep.subr.bf16.mxu0 0
        %1424 = vmatpush1.bf16.msra.mxu0 0
        %1425 = vmatprep.subr.bf16.mxu0 0
        %1426 = vmatpush1.bf16.msra.mxu0 0
        %1427 = vmatprep.mubr.bf16.mxu0 0
        %1428 = vmatmul.mubr.bf16.gmra.mrb[0].mxu0 %v1390
        %v1429 = vpop.f32.mrb[0].mxu0
        %v1430 = vadd.f32 0.0, %v1429
        %v1431 = vpop.f32.mrb[0].mxu0
        %v1432 = vpop.f32.mrb[0].mxu0
        %v1433 = vpop.f32.mrb[0].mxu0
        %1434 = vdwg.mxu0
        %v1435 = vsel %vm710, %v1430, -inf
        %1436 = vmax.xlane.f32.xlu0 %v1435
        %v1437 = vpop.xlane.xlu0 %1436
        %v1438 = vsub.f32 %v1430, %v1437
        %v1439 = vmul.f32 %v1438, 1.442695
        %v1440 = vpow.pop %v1439
        %v1441 = vsel %vm710, %v1440, 0.0
        %1442 = vadd.xlane.f32.xlu0 %v1441
        %v1443 = vpop.xlane.xlu0 %1442
        %v1444 = vrcp.pop %v1443
        %v1445 = vpack.c.bf16 %v1440, %v1440
        %v1447 = vsel %vm710, %v1445, 0
        %v1450 = vsel %vm714, %v1322, 0
        %1452 = vmatprep.subr.bf16.mxu0 0
        %1453 = vmatpush1.bf16.msra.mxu0 %v1450
        %1454 = vmatprep.subr.bf16.mxu0 0
        %1455 = vmatpush1.bf16.msra.mxu0 0
        %1456 = vmatprep.subr.bf16.mxu0 0
        %1457 = vmatpush1.bf16.msra.mxu0 0
        %1458 = vmatprep.subr.bf16.mxu0 0
        %1459 = vmatpush1.bf16.msra.mxu0 0
        %1460 = vmatprep.subr.bf16.mxu0 0
        %1461 = vmatpush1.bf16.msra.mxu0 0
        %1462 = vmatprep.subr.bf16.mxu0 0
        %1463 = vmatpush1.bf16.msra.mxu0 0
        %1464 = vmatprep.subr.bf16.mxu0 0
        %1465 = vmatpush1.bf16.msra.mxu0 0
        %1466 = vmatprep.subr.bf16.mxu0 0
        %1467 = vmatpush1.bf16.msra.mxu0 0
        %1468 = vmatprep.subr.bf16.mxu0 0
        %1469 = vmatpush1.bf16.msra.mxu0 0
        %1470 = vmatprep.subr.bf16.mxu0 0
        %1471 = vmatpush1.bf16.msra.mxu0 0
        %1472 = vmatprep.subr.bf16.mxu0 0
        %1473 = vmatpush1.bf16.msra.mxu0 0
        %1474 = vmatprep.subr.bf16.mxu0 0
        %1475 = vmatpush1.bf16.msra.mxu0 0
        %1476 = vmatprep.subr.bf16.mxu0 0
        %1477 = vmatpush1.bf16.msra.mxu0 0
        %1478 = vmatprep.subr.bf16.mxu0 0
        %1479 = vmatpush1.bf16.msra.mxu0 0
        %1480 = vmatprep.subr.bf16.mxu0 0
        %1481 = vmatpush1.bf16.msra.mxu0 0
        %1482 = vmatprep.subr.bf16.mxu0 0
        %1483 = vmatpush1.bf16.msra.mxu0 0
        %1484 = vmatprep.mubr.bf16.mxu0 0
        %1485 = vmatmul.mubr.bf16.gmra.mrb[0].mxu0 %v1447
        %v1486 = vpop.f32.mrb[0].mxu0
        %v1487 = vadd.f32 0.0, %v1486
        %v1488 = vpop.f32.mrb[0].mxu0
        %v1489 = vpop.f32.mrb[0].mxu0
        %v1490 = vpop.f32.mrb[0].mxu0
        %1491 = vdwg.mxu0
        %v1492 = vmul.f32 %v1487, %v1444
        %v1493 = vld [vmem:[#allocation2] sm:$0xff]
        %v1494 = vpack.c.bf16 %v1492, %v1492
        %s1495 = scalar_lea.vmem %s604, 12
        %v1496 = vld [vmem:[%s1495] sm:$0xf]
        %v1498 = vsel %vm710, %v1494, 0
        %v1501 = vsel %vm714, %v1496, 0
        %1503 = vmatprep.subr.bf16.mxu0 0
        %1504 = vmatpush1.bf16.msra.mxu0 %v1501
        %1505 = vmatprep.subr.bf16.mxu0 0
        %1506 = vmatpush1.bf16.msra.mxu0 0
        %1507 = vmatprep.subr.bf16.mxu0 0
        %1508 = vmatpush1.bf16.msra.mxu0 0
        %1509 = vmatprep.subr.bf16.mxu0 0
        %1510 = vmatpush1.bf16.msra.mxu0 0
        %1511 = vmatprep.subr.bf16.mxu0 0
        %1512 = vmatpush1.bf16.msra.mxu0 0
        %1513 = vmatprep.subr.bf16.mxu0 0
        %1514 = vmatpush1.bf16.msra.mxu0 0
        %1515 = vmatprep.subr.bf16.mxu0 0
        %1516 = vmatpush1.bf16.msra.mxu0 0
        %1517 = vmatprep.subr.bf16.mxu0 0
        %1518 = vmatpush1.bf16.msra.mxu0 0
        %1519 = vmatprep.subr.bf16.mxu0 0
        %1520 = vmatpush1.bf16.msra.mxu0 0
        %1521 = vmatprep.subr.bf16.mxu0 0
        %1522 = vmatpush1.bf16.msra.mxu0 0
        %1523 = vmatprep.subr.bf16.mxu0 0
        %1524 = vmatpush1.bf16.msra.mxu0 0
        %1525 = vmatprep.subr.bf16.mxu0 0
        %1526 = vmatpush1.bf16.msra.mxu0 0
        %1527 = vmatprep.subr.bf16.mxu0 0
        %1528 = vmatpush1.bf16.msra.mxu0 0
        %1529 = vmatprep.subr.bf16.mxu0 0
        %1530 = vmatpush1.bf16.msra.mxu0 0
        %1531 = vmatprep.subr.bf16.mxu0 0
        %1532 = vmatpush1.bf16.msra.mxu0 0
        %1533 = vmatprep.subr.bf16.mxu0 0
        %1534 = vmatpush1.bf16.msra.mxu0 0
        %1535 = vmatprep.mubr.bf16.mxu0 0
        %1536 = vmatmul.mubr.bf16.gmra.mrb[0].mxu0 %v1498
        %v1537 = vpop.f32.mrb[0].mxu0
        %v1538 = vadd.f32 0.0, %v1537
        %v1539 = vpop.f32.mrb[0].mxu0
        %v1540 = vpop.f32.mrb[0].mxu0
        %v1541 = vpop.f32.mrb[0].mxu0
        %1542 = vdwg.mxu0
        %v1543 = vadd.f32 %v1493, %v1538
        %1544 = vst.msk [vmem:[#allocation2] sm:$0xff] %vm665, %v1543
        // Predicated region
        $region77: #{tpu_custom_call.1} parent=71 // pred_check
          %p1545 = pneg %p607
        $region78: #{tpu_custom_call.1} parent=71 // pred_check_branch
          %1547 = sbr.rel (%p1545) target = $region80
        $region79: #{tpu_custom_call.1} parent=71 // pred_region
          %v1548 = vld [vmem:[%s567] sm:$0xff]
          %v1549 = vld [vmem:[#allocation2] sm:$0xff]
          %v1550 = vld [vmem:[%s6] sm:$0x1]
          %v1552 = vlaneseq
          %v1553 = vshrl.u32 %v1552, 7
          %v1554 = vsub.s32 0, %v1553
          %v1555 = vrot.slane %v1550, %v1554
          %v1557 = vadd.f32 %v1549, %v1555
          %v1558 = vadd.f32 %v1548, %v1557
          %v1559 = vld [vmem:[%s12] sm:$0x1]
          %v1560 = vsel %vm665, %v1558, 0.0
          %1561 = vadd.xlane.f32.xlu0 %v1560
          %v1562 = vpop.xlane.xlu0 %1561
          %v1563 = vrcp.pop 32.0
          %v1564 = vmul.f32 %v1562, %v1563
          %v1565 = vsub.f32 %v1558, %v1564
          %v1566 = vmul.f32 %v1565, %v1565
          %v1567 = vsel %vm665, %v1566, 0.0
          %1568 = vadd.xlane.f32.xlu0 %v1567
          %v1569 = vpop.xlane.xlu0 %1568
          %v1570 = vmul.f32 %v1569, %v1563
          %v1571 = vadd.f32 %v1570, 1e-05
          %v1572 = vrsqrt.pop %v1571
          %v1573 = vmul.f32 %v1565, %v1572
          %v1575 = vlaneseq
          %v1576 = vshrl.u32 %v1575, 7
          %v1577 = vsub.s32 0, %v1576
          %v1578 = vrot.slane %v1559, %v1577
          %v1580 = vmul.f32 %v1573, %v1578
          %v1581 = vpack.c.bf16 %v1580, %v1580
          %v1582 = vld [vmem:[%s7] sm:$0xf]
          %v1583 = vld [vmem:[%s7 + $0x4] sm:$0xf]
          %v1584 = vld [vmem:[%s7 + $0x8] sm:$0xf]
          %v1585 = vld [vmem:[%s7 + $0xc] sm:$0xf]
          %v1586 = vld [vmem:[%s8] sm:$0x1]
          %v1588 = vlaneseq
          %v1589 = vshrl.u32 %v1588, 7
          %v1590 = vsub.s32 0, %v1589
          %v1591 = vrot.slane %v1586, %v1590
          %v1597 = vunpack.c.l.b16 %v1582
          %v1598 = vunpack.c.l.b16 %v1583
          %v1599 = vunpack.c.l.b16 %v1584
          %v1600 = vunpack.c.l.b16 %v1585
          %v1601 = vpack.c.b16 %v1598, %v1597
          %v1602 = vpack.c.b16 %v1600, %v1599
          %v1606 = vsel %vm665, %v1581, 0
          %1608 = vmatprep.subr.bf16.mxu0 0
          %1609 = vmatpush1.bf16.msra.mxu0 %v1601
          %1610 = vmatprep.subr.bf16.mxu0 0
          %1611 = vmatpush1.bf16.msra.mxu0 %v1602
          %1612 = vmatprep.subr.bf16.mxu0 0
          %1613 = vmatpush1.bf16.msra.mxu0 0
          %1614 = vmatprep.subr.bf16.mxu0 0
          %1615 = vmatpush1.bf16.msra.mxu0 0
          %1616 = vmatprep.subr.bf16.mxu0 0
          %1617 = vmatpush1.bf16.msra.mxu0 0
          %1618 = vmatprep.subr.bf16.mxu0 0
          %1619 = vmatpush1.bf16.msra.mxu0 0
          %1620 = vmatprep.subr.bf16.mxu0 0
          %1621 = vmatpush1.bf16.msra.mxu0 0
          %1622 = vmatprep.subr.bf16.mxu0 0
          %1623 = vmatpush1.bf16.msra.mxu0 0
          %1624 = vmatprep.subr.bf16.mxu0 0
          %1625 = vmatpush1.bf16.msra.mxu0 0
          %1626 = vmatprep.subr.bf16.mxu0 0
          %1627 = vmatpush1.bf16.msra.mxu0 0
          %1628 = vmatprep.subr.bf16.mxu0 0
          %1629 = vmatpush1.bf16.msra.mxu0 0
          %1630 = vmatprep.subr.bf16.mxu0 0
          %1631 = vmatpush1.bf16.msra.mxu0 0
          %1632 = vmatprep.subr.bf16.mxu0 0
          %1633 = vmatpush1.bf16.msra.mxu0 0
          %1634 = vmatprep.subr.bf16.mxu0 0
          %1635 = vmatpush1.bf16.msra.mxu0 0
          %1636 = vmatprep.subr.bf16.mxu0 0
          %1637 = vmatpush1.bf16.msra.mxu0 0
          %1638 = vmatprep.subr.bf16.mxu0 0
          %1639 = vmatpush1.bf16.msra.mxu0 0
          %1640 = vmatprep.mubr.bf16.mxu0 0
          %1641 = vmatmul.mubr.bf16.gmra.mrb[0].mxu0 %v1606
          %v1642 = vpop.f32.mrb[0].mxu0
          %v1643 = vadd.f32 %v1591, %v1642
          %v1644 = vpop.f32.mrb[0].mxu0
          %v1645 = vpop.f32.mrb[0].mxu0
          %v1646 = vpop.f32.mrb[0].mxu0
          %1647 = vdwg.mxu0
          %v1648 = vmax.f32 %v1643, 0.0
          %v1649 = vpack.c.bf16 %v1648, %v1648
          %v1650 = vld [vmem:[%s9] sm:$0xf]
          %v1651 = vld [vmem:[%s9 + $0x4] sm:$0xf]
          %v1652 = vld [vmem:[%s9 + $0x8] sm:$0xf]
          %v1653 = vld [vmem:[%s9 + $0xc] sm:$0xf]
          %v1654 = vld [vmem:[%s9 + $0x10] sm:$0xf]
          %v1655 = vld [vmem:[%s9 + $0x14] sm:$0xf]
          %v1656 = vld [vmem:[%s9 + $0x18] sm:$0xf]
          %v1657 = vld [vmem:[%s9 + $0x1c] sm:$0xf]
          %v1658 = vld [vmem:[%s10] sm:$0x1]
          %v1660 = vlaneseq
          %v1661 = vshrl.u32 %v1660, 7
          %v1662 = vsub.s32 0, %v1661
          %v1663 = vrot.slane %v1658, %v1662
          %v1673 = vunpack.c.l.b16 %v1650
          %v1674 = vunpack.c.l.b16 %v1651
          %v1675 = vunpack.c.l.b16 %v1652
          %v1676 = vunpack.c.l.b16 %v1653
          %v1677 = vunpack.c.l.b16 %v1654
          %v1678 = vunpack.c.l.b16 %v1655
          %v1679 = vunpack.c.l.b16 %v1656
          %v1680 = vunpack.c.l.b16 %v1657
          %v1681 = vpack.c.b16 %v1674, %v1673
          %v1682 = vpack.c.b16 %v1676, %v1675
          %v1683 = vpack.c.b16 %v1678, %v1677
          %v1684 = vpack.c.b16 %v1680, %v1679
          %vm1689 = vcmask 523264
          %v1691 = vsel %vm1689, %v1649, 0
          %1693 = vmatprep.subr.bf16.mxu0 0
          %1694 = vmatpush1.bf16.msra.mxu0 %v1681
          %1695 = vmatprep.subr.bf16.mxu0 0
          %1696 = vmatpush1.bf16.msra.mxu0 %v1682
          %1697 = vmatprep.subr.bf16.mxu0 0
          %1698 = vmatpush1.bf16.msra.mxu0 %v1683
          %1699 = vmatprep.subr.bf16.mxu0 0
          %1700 = vmatpush1.bf16.msra.mxu0 %v1684
          %1701 = vmatprep.subr.bf16.mxu0 0
          %1702 = vmatpush1.bf16.msra.mxu0 0
          %1703 = vmatprep.subr.bf16.mxu0 0
          %1704 = vmatpush1.bf16.msra.mxu0 0
          %1705 = vmatprep.subr.bf16.mxu0 0
          %1706 = vmatpush1.bf16.msra.mxu0 0
          %1707 = vmatprep.subr.bf16.mxu0 0
          %1708 = vmatpush1.bf16.msra.mxu0 0
          %1709 = vmatprep.subr.bf16.mxu0 0
          %1710 = vmatpush1.bf16.msra.mxu0 0
          %1711 = vmatprep.subr.bf16.mxu0 0
          %1712 = vmatpush1.bf16.msra.mxu0 0
          %1713 = vmatprep.subr.bf16.mxu0 0
          %1714 = vmatpush1.bf16.msra.mxu0 0
          %1715 = vmatprep.subr.bf16.mxu0 0
          %1716 = vmatpush1.bf16.msra.mxu0 0
          %1717 = vmatprep.subr.bf16.mxu0 0
          %1718 = vmatpush1.bf16.msra.mxu0 0
          %1719 = vmatprep.subr.bf16.mxu0 0
          %1720 = vmatpush1.bf16.msra.mxu0 0
          %1721 = vmatprep.subr.bf16.mxu0 0
          %1722 = vmatpush1.bf16.msra.mxu0 0
          %1723 = vmatprep.subr.bf16.mxu0 0
          %1724 = vmatpush1.bf16.msra.mxu0 0
          %1725 = vmatprep.mubr.bf16.mxu0 0
          %1726 = vmatmul.mubr.bf16.gmra.mrb[0].mxu0 %v1691
          %v1727 = vpop.f32.mrb[0].mxu0
          %v1728 = vadd.f32 %v1663, %v1727
          %v1729 = vpop.f32.mrb[0].mxu0
          %v1730 = vpop.f32.mrb[0].mxu0
          %v1731 = vpop.f32.mrb[0].mxu0
          %1732 = vdwg.mxu0
          %v1733 = vadd.f32 %v1558, %v1728
          %1734 = vst.msk [vmem:[%s560] sm:$0xff] %vm665, %v1733
        $region80: #{tpu_custom_call.1} parent=71 // pred_fallthru
          _
        %s1735 = sand.u32 %s365, 1
        %s1736 = scalar_lea.sflag [#allocation5], %s1735
        %s1737 = sand.u32 %s365, 1
        %s1738 = smul.addr %s1737, 8
        %s1739 = scalar_lea.vmem [#allocation4], %s1738
        // Predicated region
        $region81: #{tpu_custom_call.1} parent=71 // pred_check
          %p1740 = pneg %p375
        $region82: #{tpu_custom_call.1} parent=71 // pred_check_branch
          %1742 = sbr.rel (%p1740) target = $region84
        $region83: #{tpu_custom_call.1} parent=71 // pred_region
          %s1744 = ssub.s32 128, 128
          %1745 = vsyncadd %s1736, %s1744
          %s1746 = sadd.s32 %s33, %s32
          %s1747 = smul.addr %s1746, 128
          %s1748 = scalar_lea.hbm %s13, %s1747
          %s1750 = sshll.u32 %s1739, 4
          %s1751 = int_to_ptr.vmem [resolvable:$true] %s1750
          %1753 = dma.vmem_to_hbm [thread:$0]  %s1751, 128, %s1748, %s1736
        $region84: #{tpu_custom_call.1} parent=71 // pred_fallthru
          _
      $region72: #{tpu_custom_call.1} parent=5 // pred_fallthru
        _
      %p1754 = scmp.le.s32.totalorder 2, %s22
      // Predicated region
      $region85: #{tpu_custom_call.1} parent=5 // pred_check
        %p1755 = pneg %p1754
      $region86: #{tpu_custom_call.1} parent=5 // pred_check_branch
        %1757 = sbr.rel (%p1755) target = $region88
      $region87: #{tpu_custom_call.1} parent=5 // pred_region
        %s1758 = ssub.s32 %s22, 2
        // Predicated region
        $region89: #{tpu_custom_call.1} parent=87 // pred_check
          %p1759 = pneg %p381
        $region90: #{tpu_custom_call.1} parent=87 // pred_check_branch
          %1761 = sbr.rel (%p1759) target = $region92
        $region91: #{tpu_custom_call.1} parent=87 // pred_region
          %s1762 = sand.u32 %s366, 1
          %s1763 = scalar_lea.sflag [#allocation5], %s1762
          %s1764 = sand.u32 %s366, 1
          %s1765 = smul.addr %s1764, 8
          %s1766 = scalar_lea.vmem [#allocation4], %s1765
          %1767 = dma.done %s1763, 128
        $region92: #{tpu_custom_call.1} parent=87 // pred_fallthru
          _
      $region88: #{tpu_custom_call.1} parent=5 // pred_fallthru
        _
    $region6: #{tpu_custom_call.1} parent=1 // loop_footer
      %s26 = sadd.s32 1, %s22
    $region7: #{tpu_custom_call.1} parent=1 // loop_footer_branch
      %21 = sbr.rel target = $region3
    $region8: #{tpu_custom_call.1} parent=1 // loop_exit
      _
    %1768 = vsyncpa [#allocation5], 1
    %s1769 = scalar_lea.sflag [#allocation5], 1
    %1770 = vsyncpa %s1769, 1

</llo_original>
